<compile_context>
chip_gen: v7x
topology: tpu7x:2x2x1
jax: 0.10.0
libtpu: 0.0.40
codegen_flags: <defaults>
</compile_context>

<pallas_src>
import jax
import jax.numpy as jnp
from jax.experimental import pallas as pl
from jax.experimental.pallas import tpu as pltpu


def _round_up(a, b):
    return ((a + b - 1) // b) * b


def _largest_divisor_leq(n, cap):
    cap = max(1, min(cap, n))
    for d in range(cap, 0, -1):
        if n % d == 0:
            return d
    return 1


def _vmem_limit_bytes():
    """~3/4 of physical VMEM: ~96 MiB on v5e/v6e (128 MiB), 48 MiB on v7x (64 MiB)."""
    cap = 64 * 1024 * 1024
    try:
        info = pltpu.get_tpu_info()
        cap = int(getattr(info, "vmem_capacity_bytes", cap) or cap)
    except Exception:
        pass
    return int(min(cap * 3 // 4, 100 * 1024 * 1024))


# ---------------- BatchNorm batch statistics (tiled Pallas reduction) ----------------

def _row_stats_kernel(x_ref, s_ref, ss_ref):
    @pl.when(pl.program_id(1) == 0)
    def _init():
        s_ref[...] = jnp.zeros_like(s_ref)
        ss_ref[...] = jnp.zeros_like(ss_ref)

    x = x_ref[...].astype(jnp.float32)
    s_ref[...] += jnp.sum(x, axis=1, keepdims=True)
    ss_ref[...] += jnp.sum(x * x, axis=1, keepdims=True)


def _per_row_sums(x2d, vmem_limit):
    """Per-row sum and sum-of-squares of a (R, L) slab (rows are (n, c) images)."""
    R0, L0 = x2d.shape
    tl = min(_round_up(L0, 128), 2048)                         # lane-dense column tile
    Lp = _round_up(L0, tl)
    tr = max(8, min(256, ((2 << 20) // (tl * 4)) // 8 * 8))    # ~2 MiB blocks
    tr = min(tr, _round_up(R0, 8))
    Rp = _round_up(R0, tr)
    if (Rp, Lp) != (R0, L0):
        # Zero padding is harmless for sums / sums of squares.
        x2d = jnp.pad(x2d, ((0, Rp - R0), (0, Lp - L0)))

    s, ss = pl.pallas_call(
        _row_stats_kernel,
        out_shape=(jax.ShapeDtypeStruct((Rp, 1), jnp.float32),
                   jax.ShapeDtypeStruct((Rp, 1), jnp.float32)),
        grid=(Rp // tr, Lp // tl),
        in_specs=[pl.BlockSpec((tr, tl), lambda r, c: (r, c))],
        out_specs=(pl.BlockSpec((tr, 1), lambda r, c: (r, 0)),
                   pl.BlockSpec((tr, 1), lambda r, c: (r, 0))),
        compiler_params=pltpu.CompilerParams(
            dimension_semantics=("parallel", "arbitrary"),
            vmem_limit_bytes=vmem_limit),
    )(x2d)
    return s[:R0, 0], ss[:R0, 0]


# ---------------- Fused (BN-folded) conv + ReLU ----------------

def relu_conv_bn(x_nchw, conv_w, gamma, beta, *, stride, padding, eps=1e-5):
    N, C_in, H, W = x_nchw.shape
    C_out, _, KH, KW = conv_w.shape
    S, P = stride, padding
    vmem_limit = _vmem_limit_bytes()

    # --- BatchNorm2d (training-mode batch stats), eps = 1e-5, affine ---
    # Free (contiguous) reshape: rows are (n, c) images, columns are H*W pixels.
    row_s, row_ss = _per_row_sums(x_nchw.reshape(N * C_in, H * W), vmem_limit)
    cnt = float(N * H * W)
    ch_s = row_s.reshape(N, C_in).sum(axis=0)
    ch_ss = row_ss.reshape(N, C_in).sum(axis=0)
    mean = ch_s / cnt
    # TODO(synk): switch to two-pass / Welford variance if activations can have
    # |mean| >> std; one-pass E[x^2]-E[x]^2 avoids a second HBM read of x.
    var = jnp.maximum(ch_ss / cnt - mean * mean, 0.0)
    scale = gamma.astype(jnp.float32) * jax.lax.rsqrt(var + eps)       # (C_in,)
    shift = beta.astype(jnp.float32) - mean * scale                    # (C_in,)

    # --- Fold BN into the conv.  y = x*scale + shift, then zero-pad, then conv.
    # The shift (and its zero-padding) is carried exactly by an extra input
    # channel that is 1 inside the image and 0 in the padding border.
    w_f32 = conv_w.astype(jnp.float32)                                 # (Co,Ci,KH,KW)
    w_scaled = w_f32 * scale[None, :, None, None]
    w_shift = jnp.einsum("ocij,c->oij", w_f32, shift)                  # (Co,KH,KW)
    C_aug = C_in + 1
    w_aug = jnp.concatenate([w_scaled, w_shift[:, None]], axis=1)      # (Co,C_aug,KH,KW)

    Cp = _round_up(C_out, 128)
    K = KH * KW * C_aug
    w_k = jnp.transpose(w_aug, (2, 3, 1, 0)).reshape(K, C_out)         # (kh,kw,c)-major
    w_k = jnp.pad(w_k, ((0, 0), (0, Cp - C_out))).astype(jnp.bfloat16)

    # --- Padded, channel-augmented bf16 NHWC image (single fused build) ---
    Hp, Wp = H + 2 * P, W + 2 * P
    interior = jnp.concatenate(
        [jnp.transpose(x_nchw, (0, 2, 3, 1)).astype(jnp.bfloat16),
         jnp.ones((N, H, W, 1), jnp.bfloat16)], axis=-1)
    xp = jnp.zeros((N, Hp, Wp, C_aug), jnp.bfloat16)
    xp = xp.at[:, P:P + H, P:P + W, :].set(interior)
    # TODO(synk): halo row-tiled input path (manual DMA) once one padded sample
    # exceeds ~8 MiB, needed for big images under v7x's 64 MiB VMEM.

    # --- Stride-1 output geometry (stride > 1 handled by subsampling below) ---
    OH1, OW1 = Hp - KH + 1, Wp - KW + 1
    OH, OW = (H + 2 * P - KH) // S + 1, (W + 2 * P - KW) // S + 1

    # Row tile: ~512 output pixels per step, but keep N*T >= ~8 grid steps so the
    # pipeline (and v7x's two cores) can overlap DMA with compute.
    pix_cap = max(1, 512 // max(OW1, 1))
    min_t = max(1, -(-8 // max(N, 1)))
    pipe_cap = max(1, OH1 // min_t)
    TOH = _largest_divisor_leq(OH1, min(pix_cap, pipe_cap))
    T = OH1 // TOH

    if C_out % 128 == 0:
        mode = "dense"            # (TOH, OW1, C_out) lane-dense store, no padding
    elif OW1 <= 64:
        mode = "flat"             # (TOH, OW1*C_out) lane-dense store, exact bytes
    else:
        mode = "narrow"           # (TOH*OW1, C_out) store, exact bytes (masked lanes)

    def conv_kernel(xp_ref, w_ref, o_ref):
        t = pl.program_id(1)
        row0 = pl.multiple_of(t * TOH, TOH)
        # In-VMEM im2col: concatenate the KH*KW shifted taps -> ONE MXU dot.
        taps = []
        for kh in range(KH):
            for kw in range(KW):
                tap = xp_ref[pl.ds(row0 + kh, TOH), pl.ds(kw, OW1), :]
                taps.append(tap.reshape(TOH * OW1, C_aug).astype(jnp.float32))
        patch = jnp.concatenate(taps, axis=-1).astype(jnp.bfloat16)    # (P, K)
        acc = jnp.dot(patch, w_ref[...], preferred_element_type=jnp.float32)
        y = jnp.maximum(acc[:, :C_out], 0.0)                           # fused ReLU
        if mode == "dense":
            o_ref[...] = y.reshape(TOH, OW1, C_out)
        elif mode == "flat":
            y3 = y.reshape(TOH, OW1, C_out)
            o_ref[...] = jnp.concatenate([y3[:, j, :] for j in range(OW1)], axis=-1)
        else:
            o_ref[...] = y

    if mode == "dense":
        out_shape = jax.ShapeDtypeStruct((N, T, TOH, OW1, C_out), jnp.float32)
        out_spec = pl.BlockSpec((None, None, TOH, OW1, C_out),
                                lambda n, t: (n, t, 0, 0, 0))
    elif mode == "flat":
        out_shape = jax.ShapeDtypeStruct((N, T, TOH, OW1 * C_out), jnp.float32)
        out_spec = pl.BlockSpec((None, None, TOH, OW1 * C_out),
                                lambda n, t: (n, t, 0, 0))
    else:
        out_shape = jax.ShapeDtypeStruct((N, T, TOH * OW1, C_out), jnp.float32)
        out_spec = pl.BlockSpec((None, None, TOH * OW1, C_out),
                                lambda n, t: (n, t, 0, 0))

    out_t = pl.pallas_call(
        conv_kernel,
        out_shape=out_shape,
        grid=(N, T),
        in_specs=[
            pl.BlockSpec((None, Hp, Wp, C_aug), lambda n, t: (n, 0, 0, 0)),
            pl.BlockSpec((K, Cp), lambda n, t: (0, 0)),
        ],
        out_specs=out_spec,
        compiler_params=pltpu.CompilerParams(
            dimension_semantics=("parallel", "parallel"),
            vmem_limit_bytes=vmem_limit),
    )(xp, w_k)

    out_nhwc = out_t.reshape(N, OH1, OW1, C_out)                       # free reshape
    if S > 1:
        # TODO(synk): correct-but-wasteful S^2 fallback; a phase-deinterleaved
        # unit-stride kernel would avoid computing the skipped pixels.
        out_nhwc = out_nhwc[:, ::S, ::S, :]
    out_nhwc = out_nhwc[:, :OH, :OW, :]
    return jnp.transpose(out_nhwc, (0, 3, 1, 2))                       # back to NCHW


# ---------------- Pure-JAX reference (for verification only) ----------------

def _reference(x_nchw, conv_w, gamma, beta, *, stride, padding, eps=1e-5):
    mean = jnp.mean(x_nchw, axis=(0, 2, 3), keepdims=True)
    var = jnp.mean((x_nchw - mean) ** 2, axis=(0, 2, 3), keepdims=True)
    y = (x_nchw - mean) * jax.lax.rsqrt(var + eps)
    y = y * gamma[None, :, None, None] + beta[None, :, None, None]
    z = jax.lax.conv_general_dilated(
        y, conv_w, window_strides=(stride, stride),
        padding=[(padding, padding), (padding, padding)],
        dimension_numbers=("NCHW", "OIHW", "NCHW"))
    return jnp.maximum(z, 0.0)


# ---------------- Main ----------------

if __name__ == "__main__":
    C_in, C_out, kernel_size, stride, padding = 4, 8, 3, 1, 1
    N, H, W = 2, 16, 16

    key = jax.random.PRNGKey(0)
    kx, kw, kg, kb = jax.random.split(key, 4)
    x = jax.random.normal(kx, (N, C_in, H, W), dtype=jnp.float32)
    conv_w = 0.1 * jax.random.normal(kw, (C_out, C_in, kernel_size, kernel_size),
                                     dtype=jnp.float32)
    gamma = 1.0 + 0.1 * jax.random.normal(kg, (C_in,), dtype=jnp.float32)
    beta = 0.1 * jax.random.normal(kb, (C_in,), dtype=jnp.float32)

    fwd = jax.jit(relu_conv_bn, static_argnames=("stride", "padding"))
    out = fwd(x, conv_w, gamma, beta, stride=stride, padding=padding)
    out = jax.block_until_ready(out)

    ref = _reference(x, conv_w, gamma, beta, stride=stride, padding=padding)
    assert out.shape == ref.shape, (out.shape, ref.shape)
    max_err = float(jnp.max(jnp.abs(out - ref)))
    # bf16 MXU inputs with fp32 accumulation -> relaxed tolerance vs fp32 reference.
    assert jnp.allclose(out, ref, atol=2e-2, rtol=2e-2), max_err

    print("KERNEL_OK")
</pallas_src>

<mosaic_0001>
module attributes {stable_mosaic.version = 11 : i64} {
  func.func @_row_stats_kernel(%arg0: i32, %arg1: i32, %arg2: memref<8x256xf32, #tpu.memory_space<vmem>>, %arg3: memref<8x1xf32, #tpu.memory_space<vmem>>, %arg4: memref<8x1xf32, #tpu.memory_space<vmem>>) attributes {dimension_semantics = [#tpu.dimension_semantics<parallel>, #tpu.dimension_semantics<arbitrary>], iteration_bounds = array<i64: 1, 1>, scalar_prefetch = 0 : i64, scratch_operands = 0 : i64, tpu.core_type = #tpu.core_type<tc>, window_params = [{transform_indices = @transform_0, window_bounds = array<i64: 8, 256>}, {transform_indices = @transform_1, window_bounds = array<i64: 8, 1>}, {transform_indices = @transform_2, window_bounds = array<i64: 8, 1>}]} {
    %c0_i32 = arith.constant 0 : i32
    %0 = arith.cmpi eq, %arg1, %c0_i32 : i32
    %1 = arith.extui %0 : i1 to i32
    %c0_i32_0 = arith.constant 0 : i32
    %2 = arith.cmpi ne, %1, %c0_i32_0 : i32
    scf.if %2 {
      %cst_11 = arith.constant 0.000000e+00 : f32
      %15 = vector.broadcast %cst_11 : f32 to vector<8x1xf32>
      %c0_12 = arith.constant 0 : index
      %c0_13 = arith.constant 0 : index
      %16 = vector.load %arg3[%c0_12, %c0_13] : memref<8x1xf32, #tpu.memory_space<vmem>>, vector<8x1xf32>
      tpu.vector_store %arg3[%c0_12, %c0_13], %15 {strides = array<i32>} : memref<8x1xf32, #tpu.memory_space<vmem>>, vector<8x1xf32>,
      %cst_14 = arith.constant 0.000000e+00 : f32
      %17 = vector.broadcast %cst_14 : f32 to vector<8x1xf32>
      %c0_15 = arith.constant 0 : index
      %c0_16 = arith.constant 0 : index
      %18 = vector.load %arg4[%c0_15, %c0_16] : memref<8x1xf32, #tpu.memory_space<vmem>>, vector<8x1xf32>
      tpu.vector_store %arg4[%c0_15, %c0_16], %17 {strides = array<i32>} : memref<8x1xf32, #tpu.memory_space<vmem>>, vector<8x1xf32>,
    } else {
    }
    %c0 = arith.constant 0 : index
    %c0_1 = arith.constant 0 : index
    %3 = vector.load %arg2[%c0, %c0_1] : memref<8x256xf32, #tpu.memory_space<vmem>>, vector<8x256xf32>
    %c0_2 = arith.constant 0 : index
    %c0_3 = arith.constant 0 : index
    %4 = vector.load %arg3[%c0_2, %c0_3] : memref<8x1xf32, #tpu.memory_space<vmem>>, vector<8x1xf32>
    %cst = arith.constant dense<0.000000e+00> : vector<8xf32>
    %5 = vector.multi_reduction <add>, %3, %cst [1] : vector<8x256xf32> to vector<8xf32>
    %6 = vector.shape_cast %5 : vector<8xf32> to vector<8x1xf32>
    %7 = arith.addf %4, %6 : vector<8x1xf32>
    %c0_4 = arith.constant 0 : index
    %c0_5 = arith.constant 0 : index
    %8 = vector.load %arg3[%c0_4, %c0_5] : memref<8x1xf32, #tpu.memory_space<vmem>>, vector<8x1xf32>
    tpu.vector_store %arg3[%c0_4, %c0_5], %7 {strides = array<i32>} : memref<8x1xf32, #tpu.memory_space<vmem>>, vector<8x1xf32>,
    %c0_6 = arith.constant 0 : index
    %c0_7 = arith.constant 0 : index
    %9 = vector.load %arg4[%c0_6, %c0_7] : memref<8x1xf32, #tpu.memory_space<vmem>>, vector<8x1xf32>
    %10 = arith.mulf %3, %3 : vector<8x256xf32>
    %cst_8 = arith.constant dense<0.000000e+00> : vector<8xf32>
    %11 = vector.multi_reduction <add>, %10, %cst_8 [1] : vector<8x256xf32> to vector<8xf32>
    %12 = vector.shape_cast %11 : vector<8xf32> to vector<8x1xf32>
    %13 = arith.addf %9, %12 : vector<8x1xf32>
    %c0_9 = arith.constant 0 : index
    %c0_10 = arith.constant 0 : index
    %14 = vector.load %arg4[%c0_9, %c0_10] : memref<8x1xf32, #tpu.memory_space<vmem>>, vector<8x1xf32>
    tpu.vector_store %arg4[%c0_9, %c0_10], %13 {strides = array<i32>} : memref<8x1xf32, #tpu.memory_space<vmem>>, vector<8x1xf32>,
    return
  }
  func.func @transform_0(%arg0: i32, %arg1: i32) -> (i32, i32) {
    %c0_i32 = arith.constant 0 : i32
    return %arg0, %arg1 : i32, i32
  }
  func.func @transform_1(%arg0: i32, %arg1: i32) -> (i32, i32) {
    %c0_i32 = arith.constant 0 : i32
    %c0_i32_0 = arith.constant 0 : i32
    return %arg0, %c0_i32 : i32, i32
  }
  func.func @transform_2(%arg0: i32, %arg1: i32) -> (i32, i32) {
    %c0_i32 = arith.constant 0 : i32
    %c0_i32_0 = arith.constant 0 : i32
    return %arg0, %c0_i32 : i32, i32
  }
}

module attributes {stable_mosaic.version = 11 : i64} {
  func.func @conv_kernel(%arg0: i32, %arg1: i32, %arg2: memref<1x18x18x5xbf16, #tpu.memory_space<vmem>>, %arg3: memref<45x128xbf16, #tpu.memory_space<vmem>>, %arg4: memref<1x1x4x128xf32, #tpu.memory_space<vmem>>) attributes {dimension_semantics = [#tpu.dimension_semantics<parallel>, #tpu.dimension_semantics<parallel>], iteration_bounds = array<i64: 2, 4>, scalar_prefetch = 0 : i64, scratch_operands = 0 : i64, tpu.core_type = #tpu.core_type<tc>, window_params = [{transform_indices = @transform_0, window_bounds = array<i64: 1, 18, 18, 5>}, {pipeline_mode = #tpu.pipeline_mode<synchronous>, transform_indices = @transform_1, window_bounds = array<i64: 45, 128>}, {transform_indices = @transform_2, window_bounds = array<i64: 1, 1, 4, 128>}]} {
    %c4_i32 = arith.constant 4 : i32
    %0 = arith.muli %arg1, %c4_i32 : i32
    %1 = tpu.assume_multiple %0, 4 : i32
    %c0_i32 = arith.constant 0 : i32
    %2 = arith.addi %1, %c0_i32 : i32
    %c0 = arith.constant 0 : index
    %3 = arith.index_cast %2 : i32 to index
    %c0_0 = arith.constant 0 : index
    %c0_1 = arith.constant 0 : index
    %4 = vector.load %arg2[%c0, %3, %c0_0, %c0_1] : memref<1x18x18x5xbf16, #tpu.memory_space<vmem>>, vector<1x4x16x5xbf16>
    %5 = vector.shape_cast %4 : vector<1x4x16x5xbf16> to vector<4x16x5xbf16>
    %6 = vector.shape_cast %5 : vector<4x16x5xbf16> to vector<64x5xbf16>
    %7 = arith.extf %6 : vector<64x5xbf16> to vector<64x5xf32>
    %c0_i32_2 = arith.constant 0 : i32
    %8 = arith.addi %1, %c0_i32_2 : i32
    %c0_3 = arith.constant 0 : index
    %9 = arith.index_cast %8 : i32 to index
    %c1 = arith.constant 1 : index
    %c0_4 = arith.constant 0 : index
    %10 = vector.load %arg2[%c0_3, %9, %c1, %c0_4] : memref<1x18x18x5xbf16, #tpu.memory_space<vmem>>, vector<1x4x16x5xbf16>
    %11 = vector.shape_cast %10 : vector<1x4x16x5xbf16> to vector<4x16x5xbf16>
    %12 = vector.shape_cast %11 : vector<4x16x5xbf16> to vector<64x5xbf16>
    %13 = arith.extf %12 : vector<64x5xbf16> to vector<64x5xf32>
    %c0_i32_5 = arith.constant 0 : i32
    %14 = arith.addi %1, %c0_i32_5 : i32
    %c0_6 = arith.constant 0 : index
    %15 = arith.index_cast %14 : i32 to index
    %c2 = arith.constant 2 : index
    %c0_7 = arith.constant 0 : index
    %16 = vector.load %arg2[%c0_6, %15, %c2, %c0_7] : memref<1x18x18x5xbf16, #tpu.memory_space<vmem>>, vector<1x4x16x5xbf16>
    %17 = vector.shape_cast %16 : vector<1x4x16x5xbf16> to vector<4x16x5xbf16>
    %18 = vector.shape_cast %17 : vector<4x16x5xbf16> to vector<64x5xbf16>
    %19 = arith.extf %18 : vector<64x5xbf16> to vector<64x5xf32>
    %c1_i32 = arith.constant 1 : i32
    %20 = arith.addi %1, %c1_i32 : i32
    %c0_8 = arith.constant 0 : index
    %21 = arith.index_cast %20 : i32 to index
    %c0_9 = arith.constant 0 : index
    %c0_10 = arith.constant 0 : index
    %22 = vector.load %arg2[%c0_8, %21, %c0_9, %c0_10] : memref<1x18x18x5xbf16, #tpu.memory_space<vmem>>, vector<1x4x16x5xbf16>
    %23 = vector.shape_cast %22 : vector<1x4x16x5xbf16> to vector<4x16x5xbf16>
    %24 = vector.shape_cast %23 : vector<4x16x5xbf16> to vector<64x5xbf16>
    %25 = arith.extf %24 : vector<64x5xbf16> to vector<64x5xf32>
    %c1_i32_11 = arith.constant 1 : i32
    %26 = arith.addi %1, %c1_i32_11 : i32
    %c0_12 = arith.constant 0 : index
    %27 = arith.index_cast %26 : i32 to index
    %c1_13 = arith.constant 1 : index
    %c0_14 = arith.constant 0 : index
    %28 = vector.load %arg2[%c0_12, %27, %c1_13, %c0_14] : memref<1x18x18x5xbf16, #tpu.memory_space<vmem>>, vector<1x4x16x5xbf16>
    %29 = vector.shape_cast %28 : vector<1x4x16x5xbf16> to vector<4x16x5xbf16>
    %30 = vector.shape_cast %29 : vector<4x16x5xbf16> to vector<64x5xbf16>
    %31 = arith.extf %30 : vector<64x5xbf16> to vector<64x5xf32>
    %c1_i32_15 = arith.constant 1 : i32
    %32 = arith.addi %1, %c1_i32_15 : i32
    %c0_16 = arith.constant 0 : index
    %33 = arith.index_cast %32 : i32 to index
    %c2_17 = arith.constant 2 : index
    %c0_18 = arith.constant 0 : index
    %34 = vector.load %arg2[%c0_16, %33, %c2_17, %c0_18] : memref<1x18x18x5xbf16, #tpu.memory_space<vmem>>, vector<1x4x16x5xbf16>
    %35 = vector.shape_cast %34 : vector<1x4x16x5xbf16> to vector<4x16x5xbf16>
    %36 = vector.shape_cast %35 : vector<4x16x5xbf16> to vector<64x5xbf16>
    %37 = arith.extf %36 : vector<64x5xbf16> to vector<64x5xf32>
    %c2_i32 = arith.constant 2 : i32
    %38 = arith.addi %1, %c2_i32 : i32
    %c0_19 = arith.constant 0 : index
    %39 = arith.index_cast %38 : i32 to index
    %c0_20 = arith.constant 0 : index
    %c0_21 = arith.constant 0 : index
    %40 = vector.load %arg2[%c0_19, %39, %c0_20, %c0_21] : memref<1x18x18x5xbf16, #tpu.memory_space<vmem>>, vector<1x4x16x5xbf16>
    %41 = vector.shape_cast %40 : vector<1x4x16x5xbf16> to vector<4x16x5xbf16>
    %42 = vector.shape_cast %41 : vector<4x16x5xbf16> to vector<64x5xbf16>
    %43 = arith.extf %42 : vector<64x5xbf16> to vector<64x5xf32>
    %c2_i32_22 = arith.constant 2 : i32
    %44 = arith.addi %1, %c2_i32_22 : i32
    %c0_23 = arith.constant 0 : index
    %45 = arith.index_cast %44 : i32 to index
    %c1_24 = arith.constant 1 : index
    %c0_25 = arith.constant 0 : index
    %46 = vector.load %arg2[%c0_23, %45, %c1_24, %c0_25] : memref<1x18x18x5xbf16, #tpu.memory_space<vmem>>, vector<1x4x16x5xbf16>
    %47 = vector.shape_cast %46 : vector<1x4x16x5xbf16> to vector<4x16x5xbf16>
    %48 = vector.shape_cast %47 : vector<4x16x5xbf16> to vector<64x5xbf16>
    %49 = arith.extf %48 : vector<64x5xbf16> to vector<64x5xf32>
    %c2_i32_26 = arith.constant 2 : i32
    %50 = arith.addi %1, %c2_i32_26 : i32
    %c0_27 = arith.constant 0 : index
    %51 = arith.index_cast %50 : i32 to index
    %c2_28 = arith.constant 2 : index
    %c0_29 = arith.constant 0 : index
    %52 = vector.load %arg2[%c0_27, %51, %c2_28, %c0_29] : memref<1x18x18x5xbf16, #tpu.memory_space<vmem>>, vector<1x4x16x5xbf16>
    %53 = vector.shape_cast %52 : vector<1x4x16x5xbf16> to vector<4x16x5xbf16>
    %54 = vector.shape_cast %53 : vector<4x16x5xbf16> to vector<64x5xbf16>
    %55 = arith.extf %54 : vector<64x5xbf16> to vector<64x5xf32>
    %56 = tpu.concatenate %7, %13, %19, %25, %31, %37, %43, %49, %55 in 1 : vector<64x5xf32>, vector<64x5xf32>, vector<64x5xf32>, vector<64x5xf32>, vector<64x5xf32>, vector<64x5xf32>, vector<64x5xf32>, vector<64x5xf32>, vector<64x5xf32> -> vector<64x45xf32>
    %57 = arith.truncf %56 : vector<64x45xf32> to vector<64x45xbf16>
    %c0_30 = arith.constant 0 : index
    %c0_31 = arith.constant 0 : index
    %58 = vector.load %arg3[%c0_30, %c0_31] : memref<45x128xbf16, #tpu.memory_space<vmem>>, vector<45x128xbf16>
    %cst = arith.constant dense<0.000000e+00> : vector<64x128xf32>
    %59 = tpu.matmul %57, %58, %cst {dimension_numbers = #tpu.dot_dimension_numbers<[1], [0], [0], [1], [0, 0, 1, 1], [], []>} : vector<64x45xbf16>, vector<45x128xbf16>, vector<64x128xf32> -> vector<64x128xf32>
    %60 = vector.extract_strided_slice %59 {offsets = [0, 0], sizes = [64, 8], strides = [1, 1]} : vector<64x128xf32> to vector<64x8xf32>
    %cst_32 = arith.constant 0.000000e+00 : f32
    %61 = vector.broadcast %cst_32 : f32 to vector<64x8xf32>
    %62 = arith.maximumf %60, %61 : vector<64x8xf32>
    %63 = vector.shape_cast %62 : vector<64x8xf32> to vector<4x16x8xf32>
    %64 = vector.extract_strided_slice %63 {offsets = [0, 0, 0], sizes = [4, 1, 8], strides = [1, 1, 1]} : vector<4x16x8xf32> to vector<4x1x8xf32>
    %65 = vector.shape_cast %64 : vector<4x1x8xf32> to vector<4x8xf32>
    %66 = vector.extract_strided_slice %63 {offsets = [0, 1, 0], sizes = [4, 1, 8], strides = [1, 1, 1]} : vector<4x16x8xf32> to vector<4x1x8xf32>
    %67 = vector.shape_cast %66 : vector<4x1x8xf32> to vector<4x8xf32>
    %68 = vector.extract_strided_slice %63 {offsets = [0, 2, 0], sizes = [4, 1, 8], strides = [1, 1, 1]} : vector<4x16x8xf32> to vector<4x1x8xf32>
    %69 = vector.shape_cast %68 : vector<4x1x8xf32> to vector<4x8xf32>
    %70 = vector.extract_strided_slice %63 {offsets = [0, 3, 0], sizes = [4, 1, 8], strides = [1, 1, 1]} : vector<4x16x8xf32> to vector<4x1x8xf32>
    %71 = vector.shape_cast %70 : vector<4x1x8xf32> to vector<4x8xf32>
    %72 = vector.extract_strided_slice %63 {offsets = [0, 4, 0], sizes = [4, 1, 8], strides = [1, 1, 1]} : vector<4x16x8xf32> to vector<4x1x8xf32>
    %73 = vector.shape_cast %72 : vector<4x1x8xf32> to vector<4x8xf32>
    %74 = vector.extract_strided_slice %63 {offsets = [0, 5, 0], sizes = [4, 1, 8], strides = [1, 1, 1]} : vector<4x16x8xf32> to vector<4x1x8xf32>
    %75 = vector.shape_cast %74 : vector<4x1x8xf32> to vector<4x8xf32>
    %76 = vector.extract_strided_slice %63 {offsets = [0, 6, 0], sizes = [4, 1, 8], strides = [1, 1, 1]} : vector<4x16x8xf32> to vector<4x1x8xf32>
    %77 = vector.shape_cast %76 : vector<4x1x8xf32> to vector<4x8xf32>
    %78 = vector.extract_strided_slice %63 {offsets = [0, 7, 0], sizes = [4, 1, 8], strides = [1, 1, 1]} : vector<4x16x8xf32> to vector<4x1x8xf32>
    %79 = vector.shape_cast %78 : vector<4x1x8xf32> to vector<4x8xf32>
    %80 = vector.extract_strided_slice %63 {offsets = [0, 8, 0], sizes = [4, 1, 8], strides = [1, 1, 1]} : vector<4x16x8xf32> to vector<4x1x8xf32>
    %81 = vector.shape_cast %80 : vector<4x1x8xf32> to vector<4x8xf32>
    %82 = vector.extract_strided_slice %63 {offsets = [0, 9, 0], sizes = [4, 1, 8], strides = [1, 1, 1]} : vector<4x16x8xf32> to vector<4x1x8xf32>
    %83 = vector.shape_cast %82 : vector<4x1x8xf32> to vector<4x8xf32>
    %84 = vector.extract_strided_slice %63 {offsets = [0, 10, 0], sizes = [4, 1, 8], strides = [1, 1, 1]} : vector<4x16x8xf32> to vector<4x1x8xf32>
    %85 = vector.shape_cast %84 : vector<4x1x8xf32> to vector<4x8xf32>
    %86 = vector.extract_strided_slice %63 {offsets = [0, 11, 0], sizes = [4, 1, 8], strides = [1, 1, 1]} : vector<4x16x8xf32> to vector<4x1x8xf32>
    %87 = vector.shape_cast %86 : vector<4x1x8xf32> to vector<4x8xf32>
    %88 = vector.extract_strided_slice %63 {offsets = [0, 12, 0], sizes = [4, 1, 8], strides = [1, 1, 1]} : vector<4x16x8xf32> to vector<4x1x8xf32>
    %89 = vector.shape_cast %88 : vector<4x1x8xf32> to vector<4x8xf32>
    %90 = vector.extract_strided_slice %63 {offsets = [0, 13, 0], sizes = [4, 1, 8], strides = [1, 1, 1]} : vector<4x16x8xf32> to vector<4x1x8xf32>
    %91 = vector.shape_cast %90 : vector<4x1x8xf32> to vector<4x8xf32>
    %92 = vector.extract_strided_slice %63 {offsets = [0, 14, 0], sizes = [4, 1, 8], strides = [1, 1, 1]} : vector<4x16x8xf32> to vector<4x1x8xf32>
    %93 = vector.shape_cast %92 : vector<4x1x8xf32> to vector<4x8xf32>
    %94 = vector.extract_strided_slice %63 {offsets = [0, 15, 0], sizes = [4, 1, 8], strides = [1, 1, 1]} : vector<4x16x8xf32> to vector<4x1x8xf32>
    %95 = vector.shape_cast %94 : vector<4x1x8xf32> to vector<4x8xf32>
    %96 = tpu.concatenate %65, %67, %69, %71, %73, %75, %77, %79, %81, %83, %85, %87, %89, %91, %93, %95 in 1 : vector<4x8xf32>, vector<4x8xf32>, vector<4x8xf32>, vector<4x8xf32>, vector<4x8xf32>, vector<4x8xf32>, vector<4x8xf32>, vector<4x8xf32>, vector<4x8xf32>, vector<4x8xf32>, vector<4x8xf32>, vector<4x8xf32>, vector<4x8xf32>, vector<4x8xf32>, vector<4x8xf32>, vector<4x8xf32> -> vector<4x128xf32>
    %c0_33 = arith.constant 0 : index
    %c0_34 = arith.constant 0 : index
    %c0_35 = arith.constant 0 : index
    %c0_36 = arith.constant 0 : index
    %97 = vector.load %arg4[%c0_33, %c0_34, %c0_35, %c0_36] : memref<1x1x4x128xf32, #tpu.memory_space<vmem>>, vector<1x1x4x128xf32>
    %98 = vector.shape_cast %97 : vector<1x1x4x128xf32> to vector<4x128xf32>
    %99 = vector.shape_cast %96 : vector<4x128xf32> to vector<1x1x4x128xf32>
    tpu.vector_store %arg4[%c0_33, %c0_34, %c0_35, %c0_36], %99 {strides = array<i32>} : memref<1x1x4x128xf32, #tpu.memory_space<vmem>>, vector<1x1x4x128xf32>,
    return
  }
  func.func @transform_0(%arg0: i32, %arg1: i32) -> (i32, i32, i32, i32) {
    %c0_i32 = arith.constant 0 : i32
    %c0_i32_0 = arith.constant 0 : i32
    %c0_i32_1 = arith.constant 0 : i32
    %c0_i32_2 = arith.constant 0 : i32
    return %arg0, %c0_i32, %c0_i32_0, %c0_i32_1 : i32, i32, i32, i32
  }
  func.func @transform_1(%arg0: i32, %arg1: i32) -> (i32, i32) {
    %c0_i32 = arith.constant 0 : i32
    %c0_i32_0 = arith.constant 0 : i32
    %c0_i32_1 = arith.constant 0 : i32
    return %c0_i32, %c0_i32_0 : i32, i32
  }
  func.func @transform_2(%arg0: i32, %arg1: i32) -> (i32, i32, i32, i32) {
    %c0_i32 = arith.constant 0 : i32
    %c0_i32_0 = arith.constant 0 : i32
    %c0_i32_1 = arith.constant 0 : i32
    return %arg0, %arg1, %c0_i32, %c0_i32_0 : i32, i32, i32, i32
  }
}

</mosaic_0001>

<llo_original>
// kernel: squeeze.2
$region0: #{squeeze.2}
  %s0 = inlined_call_operand.vmem [shape: f32[8], index: 0, kind: input, shape index: {}]
  %s1 = inlined_call_operand.vmem [shape: f32[2,4], index: 1, kind: output, shape index: {}]
  $region1: #{squeeze.2} parent=0
    #allocation0 [shape = 'u8[4096]{0}', space=vmem, size = 0x1000, scoped, tag = 'scoped mem for output reshape']
    #allocation1 [shape = 'u8[4096]{0}', space=vmem, size = 0x1000, scoped, tag = 'scoped mem for input reshape']
    %s3 = sshllo.u32 0, 1
    %v4 = vld [vmem:[%s0] sm:%s3]
    %5 = vst [vmem:[#allocation1] sm:%s3] %v4
    %v6 = vld [vmem:[#allocation1] sm:$0x1]
    %vm7 = vcmask 31744
    %8 = vst.msk [vmem:[#allocation0] sm:$0x1] %vm7, %v6
    %v9 = vld [vmem:[#allocation1] sm:$0x1]
    %10 = vrot.lane.b32.xlu0 %v9, 124
    %v11 = vpop.permute.xlu0 %10
    %vm12 = vcmask 31744
    %s13 = scalar_lea.vmem [#allocation0], 1
    %14 = vst.msk [vmem:[%s13] sm:$0x1] %vm12, %v11
    %s16 = sshllo.u32 0, 2
    %v18 = vld [vmem:[#allocation0] sm:%s16]
    %s19 = sshllo.u32 0, 2
    %20 = vst [vmem:[%s1] sm:%s19] %v18

// kernel: relu_conv_bn.2
$region0: #{relu_conv_bn.2}
  #allocation0 [shape = 'u32[]', space=smem, size = 0x4, offset = 0x4, fixed_abs, tag = 'smem constant byte address 0x4 - core index']
  #allocation1 [shape = 'u32[144,128]{1,0:T(1,128)}', space=vmem, size = 0x12000, scoped, tag = 'internal scratch']
  %s0 = inlined_call_operand.vmem [shape: f32[8,256], index: 0, kind: input, shape index: {}]
  %s1 = inlined_call_operand.vmem [shape: f32[8,1], index: 1, kind: output, shape index: {0}]
  %s2 = inlined_call_operand.vmem [shape: f32[8,1], index: 2, kind: output, shape index: {1}]
  %3 = xla_tuple %s1, %s2
  %s4 = sld [smem:[#allocation0]]
  $region26: #{relu_conv_bn.2} parent=0
    _
  %s6 = ssub.s32 1, %s4
  %s7 = scalar_select 0, %s6, %s4
  // Predicated region
  $region2: #{relu_conv_bn.2} parent=0 // pred_check
    _
  $region3: #{relu_conv_bn.2} parent=0 // pred_check_branch
    %9 = sbr.rel (0) target = $region5
  $region4: #{relu_conv_bn.2} parent=0 // pred_region
    _
  $region5: #{relu_conv_bn.2} parent=0 // pred_fallthru
    _
  %p10 = scmp.eq.s32.totalorder 0, 0
  // Predicated region
  $region6: #{relu_conv_bn.2} parent=0 // pred_check
    %p11 = pneg %p10
  $region7: #{relu_conv_bn.2} parent=0 // pred_check_branch
    %13 = sbr.rel (%p11) target = $region9
  $region8: #{relu_conv_bn.2} parent=0 // pred_region
    %vm14 = vcmask 7168
    %15 = vst.msk [vmem:[%s1] sm:$0xff] %vm14, 0.0
    %16 = vst.msk [vmem:[%s2] sm:$0xff] %vm14, 0.0
  $region9: #{relu_conv_bn.2} parent=0 // pred_fallthru
    _
  %v17 = vld [vmem:[%s0] sm:$0xff]
  %v18 = vld [vmem:[%s0 + $0x8] sm:$0xff]
  %v19 = vld [vmem:[%s1] sm:$0xff]
  %v20 = vadd.f32 %v17, %v18
  %21 = vadd.xlane.f32.xlu0 %v20
  %v22 = vpop.xlane.xlu0 %21
  %v23 = vadd.f32 %v19, %v22
  %vm24 = vcmask 7168
  %25 = vst.msk [vmem:[%s1] sm:$0xff] %vm24, %v23
  %v26 = vld [vmem:[%s2] sm:$0xff]
  %v27 = vmul.f32 %v17, %v17
  %v28 = vmul.f32 %v18, %v18
  %v29 = vadd.f32 %v27, %v28
  %30 = vadd.xlane.f32.xlu0 %v29
  %v31 = vpop.xlane.xlu0 %30
  %v32 = vadd.f32 %v26, %v31
  %33 = vst.msk [vmem:[%s2] sm:$0xff] %vm24, %v32
  // Predicated region
  $region10: #{relu_conv_bn.2} parent=0 // pred_check
    _
  $region11: #{relu_conv_bn.2} parent=0 // pred_check_branch
    %35 = sbr.rel (0) target = $region13
  $region12: #{relu_conv_bn.2} parent=0 // pred_region
    _
  $region13: #{relu_conv_bn.2} parent=0 // pred_fallthru
    _
  // Predicated region
  $region14: #{relu_conv_bn.2} parent=0 // pred_check
    _
  $region15: #{relu_conv_bn.2} parent=0 // pred_check_branch
    %37 = sbr.rel (0) target = $region17
  $region16: #{relu_conv_bn.2} parent=0 // pred_region
    _
  $region17: #{relu_conv_bn.2} parent=0 // pred_fallthru
    _
  // Predicated region
  $region18: #{relu_conv_bn.2} parent=0 // pred_check
    _
  $region19: #{relu_conv_bn.2} parent=0 // pred_check_branch
    %39 = sbr.rel (0) target = $region21
  $region20: #{relu_conv_bn.2} parent=0 // pred_region
    _
  $region21: #{relu_conv_bn.2} parent=0 // pred_fallthru
    _
  // Predicated region
  $region22: #{relu_conv_bn.2} parent=0 // pred_check
    _
  $region23: #{relu_conv_bn.2} parent=0 // pred_check_branch
    %41 = sbr.rel (0) target = $region25
  $region24: #{relu_conv_bn.2} parent=0 // pred_region
    _
  $region25: #{relu_conv_bn.2} parent=0 // pred_fallthru
    _

// kernel: relu_conv_bn.3
$region0: #{relu_conv_bn.3}
  #allocation0 [shape = 'u32[]', space=smem, size = 0x4, offset = 0x4, fixed_abs, tag = 'smem constant byte address 0x4 - core index']
  #allocation1 [shape = 'u32[144,128]{1,0:T(1,128)}', space=vmem, size = 0x12000, scoped, tag = 'internal scratch']
  %s0 = inlined_call_operand.vmem [shape: bf16[2,18,18,5], index: 0, kind: input, shape index: {}]
  %s1 = inlined_call_operand.vmem [shape: bf16[45,128], index: 1, kind: input, shape index: {}]
  %s2 = inlined_call_operand.vmem [shape: f32[2,4,4,128], index: 2, kind: output, shape index: {}]
  %s3 = sld [smem:[#allocation0]]
  $region41: #{relu_conv_bn.3} parent=0
    _
  %s5 = ssub.s32 1, %s3
  %s6 = scalar_select 0, %s5, %s3
  loop: start=0, step=1, limit=10
  $region2: #{relu_conv_bn.3} parent=0 // loop_pre_header
    _
  $region3: #{relu_conv_bn.3} parent=0 // loop_header
    %s8 = sphi 0, %s12
    %p9 = scmp.ge.s32.totalorder %s8, 10
    %s15 = sphi 0, %s27
    %s16 = sphi 0, %s23
    %s17 = sphi 0, %s15
    %s18 = sphi 0, %s16
    %s19 = sphi 0, %s17
    %s20 = sphi 0, %s18
    %s30 = sphi 0, %s32
    %s33 = sphi 0, %s30
    %s34 = sphi 0, %s33
    %s50 = sphi 0, %s34
    %s54 = sphi 0, %s54
    %s56 = sphi 0, %s54
    %s57 = sphi 0, %s56
    %s71 = sphi 0, %s57
    %s79 = sphi 0, %s81
    %s82 = sphi 0, %s79
    %s83 = sphi 0, %s82
    %s99 = sphi 0, %s83
  $region4: #{relu_conv_bn.3} parent=0 // loop_header_branch
    %11 = sbr.rel (%p9) target = $region8
  $region5: #{relu_conv_bn.3} parent=0 // loop_body
    %s13 = ssub.s32 %s8, 1
    %s14 = ssub.s32 %s8, 2
    %s21 = sadd.s32 1, %s16
    %p22 = scmp.ge.s32.totalorder %s21, 4
    %s23 = scalar_select %p22, 0, %s21
    %s24 = sadd.s32 1, %s15
    %s25 = scalar_select %p22, %s24, %s15
    %p26 = scmp.ge.s32.totalorder %s25, 2
    %s27 = scalar_select %p26, 0, %s25
    %s28 = ssub.s32 %s15, %s27
    %p29 = scmp.eq.s32.totalorder %s28, 0
    %s31 = sadd.s32 %s30, 1
    %s32 = scalar_select %p29, %s30, %s31
    %p35 = pneg %p29
    %p36 = scmp.eq.s32.totalorder %s8, 7
    %p37 = por %p35, %p36
    %p38 = scmp.ne.s32.totalorder %s30, %s33
    %p39 = scmp.eq.s32.totalorder %s8, 0
    %p40 = por %p38, %p39
    %p41 = scmp.ne.s32.totalorder %s30, %s33
    %p42 = scmp.eq.s32.totalorder %s13, 7
    %p43 = por %p41, %p42
    %p44 = scmp.ne.s32.totalorder %s33, %s34
    %p45 = scmp.eq.s32.totalorder %s13, 0
    %p46 = por %p44, %p45
    %p47 = scmp.ne.s32.totalorder %s33, %s34
    %p48 = scmp.eq.s32.totalorder %s14, 7
    %p49 = por %p47, %p48
    %p51 = scmp.ne.s32.totalorder %s34, %s50
    %p52 = scmp.eq.s32.totalorder %s14, 0
    %p53 = por %p51, %p52
    %s55 = sadd.s32 %s54, 1
    %p58 = scmp.eq.s32.totalorder %s8, 7
    %p59 = scmp.ne.s32.totalorder %s54, %s56
    %p60 = scmp.eq.s32.totalorder %s8, 0
    %p61 = por %p59, %p60
    %p62 = scmp.ne.s32.totalorder %s54, %s56
    %p63 = scmp.eq.s32.totalorder %s13, 7
    %p64 = por %p62, %p63
    %p65 = scmp.ne.s32.totalorder %s56, %s57
    %p66 = scmp.eq.s32.totalorder %s13, 0
    %p67 = por %p65, %p66
    %p68 = scmp.ne.s32.totalorder %s56, %s57
    %p69 = scmp.eq.s32.totalorder %s14, 7
    %p70 = por %p68, %p69
    %p72 = scmp.ne.s32.totalorder %s57, %s71
    %p73 = scmp.eq.s32.totalorder %s14, 0
    %p74 = por %p72, %p73
    %s75 = ssub.s32 %s15, %s27
    %s76 = ssub.s32 %s16, %s23
    %s77 = sor.u32 %s75, %s76
    %p78 = scmp.eq.s32.totalorder %s77, 0
    %s80 = sadd.s32 %s79, 1
    %s81 = scalar_select %p78, %s79, %s80
    %p84 = pneg %p78
    %p85 = scmp.eq.s32.totalorder %s8, 7
    %p86 = por %p84, %p85
    %p87 = scmp.ne.s32.totalorder %s79, %s82
    %p88 = scmp.eq.s32.totalorder %s8, 0
    %p89 = por %p87, %p88
    %p90 = scmp.ne.s32.totalorder %s79, %s82
    %p91 = scmp.eq.s32.totalorder %s13, 7
    %p92 = por %p90, %p91
    %p93 = scmp.ne.s32.totalorder %s82, %s83
    %p94 = scmp.eq.s32.totalorder %s13, 0
    %p95 = por %p93, %p94
    %p96 = scmp.ne.s32.totalorder %s82, %s83
    %p97 = scmp.eq.s32.totalorder %s14, 7
    %p98 = por %p96, %p97
    %p100 = scmp.ne.s32.totalorder %s83, %s99
    %p101 = scmp.eq.s32.totalorder %s14, 0
    %p102 = por %p100, %p101
    %p103 = scmp.le.s32.totalorder 1, %s8
    %p104 = scmp.lt.s32.totalorder %s8, 9
    %p105 = pnand %p103, %p104
    %p106 = pneg %p105
    // Predicated region
    $region9: #{relu_conv_bn.3} parent=5 // pred_check
      _
    $region10: #{relu_conv_bn.3} parent=5 // pred_check_branch
      %108 = sbr.rel (%p105) target = $region12
    $region11: #{relu_conv_bn.3} parent=5 // pred_region
      %s109 = ssub.s32 %s8, 1
      // Predicated region
      $region13: #{relu_conv_bn.3} parent=11 // pred_check
        %p110 = pneg %p67
      $region14: #{relu_conv_bn.3} parent=11 // pred_check_branch
        %112 = sbr.rel (%p110) target = $region16
      $region15: #{relu_conv_bn.3} parent=11 // pred_region
        _
      $region16: #{relu_conv_bn.3} parent=11 // pred_fallthru
        _
    $region12: #{relu_conv_bn.3} parent=5 // pred_fallthru
      _
    %p113 = scmp.lt.s32.totalorder %s8, 8
    // Predicated region
    $region17: #{relu_conv_bn.3} parent=5 // pred_check
      %p114 = pneg %p113
    $region18: #{relu_conv_bn.3} parent=5 // pred_check_branch
      %116 = sbr.rel (%p114) target = $region20
    $region19: #{relu_conv_bn.3} parent=5 // pred_region
      // Predicated region
      $region21: #{relu_conv_bn.3} parent=19 // pred_check
        %p117 = pneg %p40
      $region22: #{relu_conv_bn.3} parent=19 // pred_check_branch
        %119 = sbr.rel (%p117) target = $region24
      $region23: #{relu_conv_bn.3} parent=19 // pred_region
        %p120 = scmp.lt.s32.totalorder %s15, 1
        %s121 = scalar_select %p120, %s15, 1
        %s122 = smul.addr %s121, 54
        %s123 = smul.addr %s122, 4
        %s124 = scalar_lea.vmem %s0, %s123
      $region24: #{relu_conv_bn.3} parent=19 // pred_fallthru
        _
    $region20: #{relu_conv_bn.3} parent=5 // pred_fallthru
      _
    %p125 = scmp.le.s32.totalorder 1, %s8
    %p126 = scmp.lt.s32.totalorder %s8, 9
    %p127 = pnand %p125, %p126
    %p128 = pneg %p127
    // Predicated region
    $region25: #{relu_conv_bn.3} parent=5 // pred_check
      _
    $region26: #{relu_conv_bn.3} parent=5 // pred_check_branch
      %130 = sbr.rel (%p127) target = $region28
    $region27: #{relu_conv_bn.3} parent=5 // pred_region
      %s131 = ssub.s32 %s8, 1
      %p132 = scmp.lt.s32.totalorder %s17, 1
      %s133 = scalar_select %p132, %s17, 1
      %s134 = smul.addr %s133, 54
      %s135 = smul.addr %s134, 4
      %s136 = scalar_lea.vmem %s0, %s135
      %p137 = pneg %p46
      %p138 = pneg %p43
      %p139 = pneg %p67
      %p140 = pneg %p64
      %p141 = pneg %p95
      %p142 = pneg %p92
      %p143 = scmp.lt.s32.totalorder %s17, 1
      %s144 = scalar_select %p143, %s17, 1
      %p145 = scmp.lt.s32.totalorder %s18, 3
      %s146 = scalar_select %p145, %s18, 3
      %s147 = smul.addr %s144, 4
      %s148 = sadd.s32 %s146, %s147
      %s149 = smul.addr %s148, 4
      %s150 = scalar_lea.vmem %s2, %s149
      %p151 = scmp.lt.s32.totalorder %s17, 1
      %s152 = scalar_select %p151, %s17, 1
      %s153 = smul.addr %s152, 54
      %s154 = smul.addr %s153, 4
      %s155 = scalar_lea.vmem %s0, %s154
      %p156 = scmp.lt.s32.totalorder %s17, 1
      %s157 = scalar_select %p156, %s17, 1
      %p158 = scmp.lt.s32.totalorder %s18, 3
      %s159 = scalar_select %p158, %s18, 3
      %s160 = smul.addr %s157, 4
      %s161 = sadd.s32 %s159, %s160
      %s162 = smul.addr %s161, 4
      %s163 = scalar_lea.vmem %s2, %s162
      %s165 = smul.u32 %s18, 4
      %s166 = smul.u32 %s165, 3
      %s167 = smul.addr %s166, 4
      %s168 = scalar_lea.vmem %s155, %s167
      %v169 = vld [vmem:[%s168] sm:$0xf]
      %v170 = vld [vmem:[%s168 + $0x4] sm:$0xf]
      %v171 = vld [vmem:[%s168 + $0xc] sm:$0xf]
      %v172 = vld [vmem:[%s168 + $0x10] sm:$0xf]
      %v173 = vld [vmem:[%s168 + $0x18] sm:$0xf]
      %v174 = vld [vmem:[%s168 + $0x1c] sm:$0xf]
      %v175 = vld [vmem:[%s168 + $0x24] sm:$0xf]
      %v176 = vld [vmem:[%s168 + $0x28] sm:$0xf]
      %v177 = vunpack.c.l.bf16 %v169
      %v178 = vunpack.c.l.bf16 %v170
      %v179 = vunpack.c.l.bf16 %v171
      %v180 = vunpack.c.l.bf16 %v172
      %v181 = vunpack.c.l.bf16 %v173
      %v182 = vunpack.c.l.bf16 %v174
      %v183 = vunpack.c.l.bf16 %v175
      %v184 = vunpack.c.l.bf16 %v176
      %v185 = vld [vmem:[%s168 + $0x8] sm:$0x1]
      %v186 = vld [vmem:[%s168 + $0x14] sm:$0x1]
      %v187 = vld [vmem:[%s168 + $0x20] sm:$0x1]
      %v188 = vld [vmem:[%s168 + $0x2c] sm:$0x1]
      %vm189 = vsmask.f32 3328
      %vm190 = vsmask.f32 7440
      %vm191 = vmor %vm189, %vm190
      %v193 = vshrl.u32 %v169, 16
      %v195 = vrot.slane %v193, 4
      %v196 = vshll.u32 %v169, 16
      %v198 = vrot.slane %v196, 5
      %v199 = vor.u32 %v195, %v198
      %v200 = vrot.slane %v199, 4
      %v202 = vshll.u32 %v170, 16
      %v204 = vrot.slane %v202, 5
      %v205 = vsel %vm191, %v200, %v204
      %v206 = vshrl.u32 %v170, 16
      %v208 = vrot.slane %v206, 4
      %v209 = vor.u32 %v208, %v204
      %v210 = vrot.slane %v209, 4
      %v212 = vshll.u32 %v185, 16
      %v214 = vrot.slane %v212, 5
      %v215 = vsel %vm191, %v210, %v214
      %v217 = vshrl.u32 %v171, 16
      %v219 = vrot.slane %v217, 4
      %v220 = vshll.u32 %v171, 16
      %v222 = vrot.slane %v220, 5
      %v223 = vor.u32 %v219, %v222
      %v224 = vrot.slane %v223, 4
      %v226 = vshll.u32 %v172, 16
      %v228 = vrot.slane %v226, 5
      %v229 = vsel %vm191, %v224, %v228
      %v230 = vshrl.u32 %v172, 16
      %v232 = vrot.slane %v230, 4
      %v233 = vor.u32 %v232, %v228
      %v234 = vrot.slane %v233, 4
      %v236 = vshll.u32 %v186, 16
      %v238 = vrot.slane %v236, 5
      %v239 = vsel %vm191, %v234, %v238
      %v241 = vshrl.u32 %v173, 16
      %v243 = vrot.slane %v241, 4
      %v244 = vshll.u32 %v173, 16
      %v246 = vrot.slane %v244, 5
      %v247 = vor.u32 %v243, %v246
      %v248 = vrot.slane %v247, 4
      %v250 = vshll.u32 %v174, 16
      %v252 = vrot.slane %v250, 5
      %v253 = vsel %vm191, %v248, %v252
      %v254 = vshrl.u32 %v174, 16
      %v256 = vrot.slane %v254, 4
      %v257 = vor.u32 %v256, %v252
      %v258 = vrot.slane %v257, 4
      %v260 = vshll.u32 %v187, 16
      %v262 = vrot.slane %v260, 5
      %v263 = vsel %vm191, %v258, %v262
      %v265 = vshrl.u32 %v175, 16
      %v267 = vrot.slane %v265, 4
      %v268 = vshll.u32 %v175, 16
      %v270 = vrot.slane %v268, 5
      %v271 = vor.u32 %v267, %v270
      %v272 = vrot.slane %v271, 4
      %v274 = vshll.u32 %v176, 16
      %v276 = vrot.slane %v274, 5
      %v277 = vsel %vm191, %v272, %v276
      %v278 = vshrl.u32 %v176, 16
      %v280 = vrot.slane %v278, 4
      %v281 = vor.u32 %v280, %v276
      %v282 = vrot.slane %v281, 4
      %v284 = vshll.u32 %v188, 16
      %v286 = vrot.slane %v284, 5
      %v287 = vsel %vm191, %v282, %v286
      %v296 = vunpack.c.l.bf16 %v205
      %v297 = vunpack.c.l.bf16 %v215
      %v298 = vunpack.c.l.bf16 %v229
      %v299 = vunpack.c.l.bf16 %v239
      %v300 = vunpack.c.l.bf16 %v253
      %v301 = vunpack.c.l.bf16 %v263
      %v302 = vunpack.c.l.bf16 %v277
      %v303 = vunpack.c.l.bf16 %v287
      %v304 = vld [vmem:[%s168] sm:$0xe]
      %v305 = vld [vmem:[%s168 + $0xc] sm:$0xe]
      %v306 = vld [vmem:[%s168 + $0x18] sm:$0xe]
      %v307 = vld [vmem:[%s168 + $0x24] sm:$0xe]
      %vm320 = vcmask 1042432
      %vm321 = vcmask 1046532
      %vm322 = vmor %vm320, %vm321
      %v323 = vrot.slane %v304, 5
      %v324 = vrot.slane %v323, 4
      %v325 = vrot.slane %v170, 5
      %v326 = vsel %vm322, %v324, %v325
      %v327 = vrot.slane %v325, 4
      %v328 = vrot.slane %v185, 5
      %v329 = vsel %vm322, %v327, %v328
      %v330 = vrot.slane %v305, 5
      %v331 = vrot.slane %v330, 4
      %v332 = vrot.slane %v172, 5
      %v333 = vsel %vm322, %v331, %v332
      %v334 = vrot.slane %v332, 4
      %v335 = vrot.slane %v186, 5
      %v336 = vsel %vm322, %v334, %v335
      %v337 = vrot.slane %v306, 5
      %v338 = vrot.slane %v337, 4
      %v339 = vrot.slane %v174, 5
      %v340 = vsel %vm322, %v338, %v339
      %v341 = vrot.slane %v339, 4
      %v342 = vrot.slane %v187, 5
      %v343 = vsel %vm322, %v341, %v342
      %v344 = vrot.slane %v307, 5
      %v345 = vrot.slane %v344, 4
      %v346 = vrot.slane %v176, 5
      %v347 = vsel %vm322, %v345, %v346
      %v348 = vrot.slane %v346, 4
      %v349 = vrot.slane %v188, 5
      %v350 = vsel %vm322, %v348, %v349
      %v359 = vunpack.c.l.bf16 %v326
      %v360 = vunpack.c.l.bf16 %v329
      %v361 = vunpack.c.l.bf16 %v333
      %v362 = vunpack.c.l.bf16 %v336
      %v363 = vunpack.c.l.bf16 %v340
      %v364 = vunpack.c.l.bf16 %v343
      %v365 = vunpack.c.l.bf16 %v347
      %v366 = vunpack.c.l.bf16 %v350
      %s367 = sadd.s32 %s165, 1
      %s368 = smul.u32 %s367, 3
      %s369 = smul.addr %s368, 4
      %s370 = scalar_lea.vmem %s155, %s369
      %v371 = vld [vmem:[%s370] sm:$0xf]
      %v372 = vld [vmem:[%s370 + $0x4] sm:$0xf]
      %v373 = vld [vmem:[%s370 + $0xc] sm:$0xf]
      %v374 = vld [vmem:[%s370 + $0x10] sm:$0xf]
      %v375 = vld [vmem:[%s370 + $0x18] sm:$0xf]
      %v376 = vld [vmem:[%s370 + $0x1c] sm:$0xf]
      %v377 = vld [vmem:[%s370 + $0x24] sm:$0xf]
      %v378 = vld [vmem:[%s370 + $0x28] sm:$0xf]
      %v379 = vunpack.c.l.bf16 %v371
      %v380 = vunpack.c.l.bf16 %v372
      %v381 = vunpack.c.l.bf16 %v373
      %v382 = vunpack.c.l.bf16 %v374
      %v383 = vunpack.c.l.bf16 %v375
      %v384 = vunpack.c.l.bf16 %v376
      %v385 = vunpack.c.l.bf16 %v377
      %v386 = vunpack.c.l.bf16 %v378
      %v387 = vld [vmem:[%s370 + $0x8] sm:$0x1]
      %v388 = vld [vmem:[%s370 + $0x14] sm:$0x1]
      %v389 = vld [vmem:[%s370 + $0x20] sm:$0x1]
      %v390 = vld [vmem:[%s370 + $0x2c] sm:$0x1]
      %v392 = vshrl.u32 %v371, 16
      %v394 = vrot.slane %v392, 4
      %v395 = vshll.u32 %v371, 16
      %v397 = vrot.slane %v395, 5
      %v398 = vor.u32 %v394, %v397
      %v399 = vrot.slane %v398, 4
      %v401 = vshll.u32 %v372, 16
      %v403 = vrot.slane %v401, 5
      %v404 = vsel %vm191, %v399, %v403
      %v405 = vshrl.u32 %v372, 16
      %v407 = vrot.slane %v405, 4
      %v408 = vor.u32 %v407, %v403
      %v409 = vrot.slane %v408, 4
      %v411 = vshll.u32 %v387, 16
      %v413 = vrot.slane %v411, 5
      %v414 = vsel %vm191, %v409, %v413
      %v416 = vshrl.u32 %v373, 16
      %v418 = vrot.slane %v416, 4
      %v419 = vshll.u32 %v373, 16
      %v421 = vrot.slane %v419, 5
      %v422 = vor.u32 %v418, %v421
      %v423 = vrot.slane %v422, 4
      %v425 = vshll.u32 %v374, 16
      %v427 = vrot.slane %v425, 5
      %v428 = vsel %vm191, %v423, %v427
      %v429 = vshrl.u32 %v374, 16
      %v431 = vrot.slane %v429, 4
      %v432 = vor.u32 %v431, %v427
      %v433 = vrot.slane %v432, 4
      %v435 = vshll.u32 %v388, 16
      %v437 = vrot.slane %v435, 5
      %v438 = vsel %vm191, %v433, %v437
      %v440 = vshrl.u32 %v375, 16
      %v442 = vrot.slane %v440, 4
      %v443 = vshll.u32 %v375, 16
      %v445 = vrot.slane %v443, 5
      %v446 = vor.u32 %v442, %v445
      %v447 = vrot.slane %v446, 4
      %v449 = vshll.u32 %v376, 16
      %v451 = vrot.slane %v449, 5
      %v452 = vsel %vm191, %v447, %v451
      %v453 = vshrl.u32 %v376, 16
      %v455 = vrot.slane %v453, 4
      %v456 = vor.u32 %v455, %v451
      %v457 = vrot.slane %v456, 4
      %v459 = vshll.u32 %v389, 16
      %v461 = vrot.slane %v459, 5
      %v462 = vsel %vm191, %v457, %v461
      %v464 = vshrl.u32 %v377, 16
      %v466 = vrot.slane %v464, 4
      %v467 = vshll.u32 %v377, 16
      %v469 = vrot.slane %v467, 5
      %v470 = vor.u32 %v466, %v469
      %v471 = vrot.slane %v470, 4
      %v473 = vshll.u32 %v378, 16
      %v475 = vrot.slane %v473, 5
      %v476 = vsel %vm191, %v471, %v475
      %v477 = vshrl.u32 %v378, 16
      %v479 = vrot.slane %v477, 4
      %v480 = vor.u32 %v479, %v475
      %v481 = vrot.slane %v480, 4
      %v483 = vshll.u32 %v390, 16
      %v485 = vrot.slane %v483, 5
      %v486 = vsel %vm191, %v481, %v485
      %v495 = vunpack.c.l.bf16 %v404
      %v496 = vunpack.c.l.bf16 %v414
      %v497 = vunpack.c.l.bf16 %v428
      %v498 = vunpack.c.l.bf16 %v438
      %v499 = vunpack.c.l.bf16 %v452
      %v500 = vunpack.c.l.bf16 %v462
      %v501 = vunpack.c.l.bf16 %v476
      %v502 = vunpack.c.l.bf16 %v486
      %v503 = vld [vmem:[%s370] sm:$0xe]
      %v504 = vld [vmem:[%s370 + $0xc] sm:$0xe]
      %v505 = vld [vmem:[%s370 + $0x18] sm:$0xe]
      %v506 = vld [vmem:[%s370 + $0x24] sm:$0xe]
      %v519 = vrot.slane %v503, 5
      %v520 = vrot.slane %v519, 4
      %v521 = vrot.slane %v372, 5
      %v522 = vsel %vm322, %v520, %v521
      %v523 = vrot.slane %v521, 4
      %v524 = vrot.slane %v387, 5
      %v525 = vsel %vm322, %v523, %v524
      %v526 = vrot.slane %v504, 5
      %v527 = vrot.slane %v526, 4
      %v528 = vrot.slane %v374, 5
      %v529 = vsel %vm322, %v527, %v528
      %v530 = vrot.slane %v528, 4
      %v531 = vrot.slane %v388, 5
      %v532 = vsel %vm322, %v530, %v531
      %v533 = vrot.slane %v505, 5
      %v534 = vrot.slane %v533, 4
      %v535 = vrot.slane %v376, 5
      %v536 = vsel %vm322, %v534, %v535
      %v537 = vrot.slane %v535, 4
      %v538 = vrot.slane %v389, 5
      %v539 = vsel %vm322, %v537, %v538
      %v540 = vrot.slane %v506, 5
      %v541 = vrot.slane %v540, 4
      %v542 = vrot.slane %v378, 5
      %v543 = vsel %vm322, %v541, %v542
      %v544 = vrot.slane %v542, 4
      %v545 = vrot.slane %v390, 5
      %v546 = vsel %vm322, %v544, %v545
      %v555 = vunpack.c.l.bf16 %v522
      %v556 = vunpack.c.l.bf16 %v525
      %v557 = vunpack.c.l.bf16 %v529
      %v558 = vunpack.c.l.bf16 %v532
      %v559 = vunpack.c.l.bf16 %v536
      %v560 = vunpack.c.l.bf16 %v539
      %v561 = vunpack.c.l.bf16 %v543
      %v562 = vunpack.c.l.bf16 %v546
      %s563 = sadd.s32 %s165, 2
      %s564 = smul.u32 %s563, 3
      %s565 = smul.addr %s564, 4
      %s566 = scalar_lea.vmem %s155, %s565
      %v567 = vld [vmem:[%s566] sm:$0xf]
      %v568 = vld [vmem:[%s566 + $0x4] sm:$0xf]
      %v569 = vld [vmem:[%s566 + $0xc] sm:$0xf]
      %v570 = vld [vmem:[%s566 + $0x10] sm:$0xf]
      %v571 = vld [vmem:[%s566 + $0x18] sm:$0xf]
      %v572 = vld [vmem:[%s566 + $0x1c] sm:$0xf]
      %v573 = vld [vmem:[%s566 + $0x24] sm:$0xf]
      %v574 = vld [vmem:[%s566 + $0x28] sm:$0xf]
      %v575 = vunpack.c.l.bf16 %v567
      %v576 = vunpack.c.l.bf16 %v568
      %v577 = vunpack.c.l.bf16 %v569
      %v578 = vunpack.c.l.bf16 %v570
      %v579 = vunpack.c.l.bf16 %v571
      %v580 = vunpack.c.l.bf16 %v572
      %v581 = vunpack.c.l.bf16 %v573
      %v582 = vunpack.c.l.bf16 %v574
      %v583 = vld [vmem:[%s566 + $0x8] sm:$0x1]
      %v584 = vld [vmem:[%s566 + $0x14] sm:$0x1]
      %v585 = vld [vmem:[%s566 + $0x20] sm:$0x1]
      %v586 = vld [vmem:[%s566 + $0x2c] sm:$0x1]
      %v588 = vshrl.u32 %v567, 16
      %v590 = vrot.slane %v588, 4
      %v591 = vshll.u32 %v567, 16
      %v593 = vrot.slane %v591, 5
      %v594 = vor.u32 %v590, %v593
      %v595 = vrot.slane %v594, 4
      %v597 = vshll.u32 %v568, 16
      %v599 = vrot.slane %v597, 5
      %v600 = vsel %vm191, %v595, %v599
      %v601 = vshrl.u32 %v568, 16
      %v603 = vrot.slane %v601, 4
      %v604 = vor.u32 %v603, %v599
      %v605 = vrot.slane %v604, 4
      %v607 = vshll.u32 %v583, 16
      %v609 = vrot.slane %v607, 5
      %v610 = vsel %vm191, %v605, %v609
      %v612 = vshrl.u32 %v569, 16
      %v614 = vrot.slane %v612, 4
      %v615 = vshll.u32 %v569, 16
      %v617 = vrot.slane %v615, 5
      %v618 = vor.u32 %v614, %v617
      %v619 = vrot.slane %v618, 4
      %v621 = vshll.u32 %v570, 16
      %v623 = vrot.slane %v621, 5
      %v624 = vsel %vm191, %v619, %v623
      %v625 = vshrl.u32 %v570, 16
      %v627 = vrot.slane %v625, 4
      %v628 = vor.u32 %v627, %v623
      %v629 = vrot.slane %v628, 4
      %v631 = vshll.u32 %v584, 16
      %v633 = vrot.slane %v631, 5
      %v634 = vsel %vm191, %v629, %v633
      %v636 = vshrl.u32 %v571, 16
      %v638 = vrot.slane %v636, 4
      %v639 = vshll.u32 %v571, 16
      %v641 = vrot.slane %v639, 5
      %v642 = vor.u32 %v638, %v641
      %v643 = vrot.slane %v642, 4
      %v645 = vshll.u32 %v572, 16
      %v647 = vrot.slane %v645, 5
      %v648 = vsel %vm191, %v643, %v647
      %v649 = vshrl.u32 %v572, 16
      %v651 = vrot.slane %v649, 4
      %v652 = vor.u32 %v651, %v647
      %v653 = vrot.slane %v652, 4
      %v655 = vshll.u32 %v585, 16
      %v657 = vrot.slane %v655, 5
      %v658 = vsel %vm191, %v653, %v657
      %v660 = vshrl.u32 %v573, 16
      %v662 = vrot.slane %v660, 4
      %v663 = vshll.u32 %v573, 16
      %v665 = vrot.slane %v663, 5
      %v666 = vor.u32 %v662, %v665
      %v667 = vrot.slane %v666, 4
      %v669 = vshll.u32 %v574, 16
      %v671 = vrot.slane %v669, 5
      %v672 = vsel %vm191, %v667, %v671
      %v673 = vshrl.u32 %v574, 16
      %v675 = vrot.slane %v673, 4
      %v676 = vor.u32 %v675, %v671
      %v677 = vrot.slane %v676, 4
      %v679 = vshll.u32 %v586, 16
      %v681 = vrot.slane %v679, 5
      %v682 = vsel %vm191, %v677, %v681
      %v691 = vunpack.c.l.bf16 %v600
      %v692 = vunpack.c.l.bf16 %v610
      %v693 = vunpack.c.l.bf16 %v624
      %v694 = vunpack.c.l.bf16 %v634
      %v695 = vunpack.c.l.bf16 %v648
      %v696 = vunpack.c.l.bf16 %v658
      %v697 = vunpack.c.l.bf16 %v672
      %v698 = vunpack.c.l.bf16 %v682
      %v699 = vld [vmem:[%s566] sm:$0xe]
      %v700 = vld [vmem:[%s566 + $0xc] sm:$0xe]
      %v701 = vld [vmem:[%s566 + $0x18] sm:$0xe]
      %v702 = vld [vmem:[%s566 + $0x24] sm:$0xe]
      %v715 = vrot.slane %v699, 5
      %v716 = vrot.slane %v715, 4
      %v717 = vrot.slane %v568, 5
      %v718 = vsel %vm322, %v716, %v717
      %v719 = vrot.slane %v717, 4
      %v720 = vrot.slane %v583, 5
      %v721 = vsel %vm322, %v719, %v720
      %v722 = vrot.slane %v700, 5
      %v723 = vrot.slane %v722, 4
      %v724 = vrot.slane %v570, 5
      %v725 = vsel %vm322, %v723, %v724
      %v726 = vrot.slane %v724, 4
      %v727 = vrot.slane %v584, 5
      %v728 = vsel %vm322, %v726, %v727
      %v729 = vrot.slane %v701, 5
      %v730 = vrot.slane %v729, 4
      %v731 = vrot.slane %v572, 5
      %v732 = vsel %vm322, %v730, %v731
      %v733 = vrot.slane %v731, 4
      %v734 = vrot.slane %v585, 5
      %v735 = vsel %vm322, %v733, %v734
      %v736 = vrot.slane %v702, 5
      %v737 = vrot.slane %v736, 4
      %v738 = vrot.slane %v574, 5
      %v739 = vsel %vm322, %v737, %v738
      %v740 = vrot.slane %v738, 4
      %v741 = vrot.slane %v586, 5
      %v742 = vsel %vm322, %v740, %v741
      %v751 = vunpack.c.l.bf16 %v718
      %v752 = vunpack.c.l.bf16 %v721
      %v753 = vunpack.c.l.bf16 %v725
      %v754 = vunpack.c.l.bf16 %v728
      %v755 = vunpack.c.l.bf16 %v732
      %v756 = vunpack.c.l.bf16 %v735
      %v757 = vunpack.c.l.bf16 %v739
      %v758 = vunpack.c.l.bf16 %v742
      %767 = vrot.lane.b32.xlu0 %v296, 5
      %v768 = vpop.permute.xlu0 %767
      %769 = vrot.lane.b32.xlu0 %v297, 5
      %v770 = vpop.permute.xlu0 %769
      %771 = vrot.lane.b32.xlu0 %v298, 5
      %v772 = vpop.permute.xlu0 %771
      %773 = vrot.lane.b32.xlu0 %v299, 5
      %v774 = vpop.permute.xlu0 %773
      %775 = vrot.lane.b32.xlu0 %v300, 5
      %v776 = vpop.permute.xlu0 %775
      %777 = vrot.lane.b32.xlu0 %v301, 5
      %v778 = vpop.permute.xlu0 %777
      %779 = vrot.lane.b32.xlu0 %v302, 5
      %v780 = vpop.permute.xlu0 %779
      %781 = vrot.lane.b32.xlu0 %v303, 5
      %v782 = vpop.permute.xlu0 %781
      %799 = vrot.lane.b32.xlu0 %v359, 10
      %v800 = vpop.permute.xlu0 %799
      %801 = vrot.lane.b32.xlu0 %v360, 10
      %v802 = vpop.permute.xlu0 %801
      %803 = vrot.lane.b32.xlu0 %v361, 10
      %v804 = vpop.permute.xlu0 %803
      %805 = vrot.lane.b32.xlu0 %v362, 10
      %v806 = vpop.permute.xlu0 %805
      %807 = vrot.lane.b32.xlu0 %v363, 10
      %v808 = vpop.permute.xlu0 %807
      %809 = vrot.lane.b32.xlu0 %v364, 10
      %v810 = vpop.permute.xlu0 %809
      %811 = vrot.lane.b32.xlu0 %v365, 10
      %v812 = vpop.permute.xlu0 %811
      %813 = vrot.lane.b32.xlu0 %v366, 10
      %v814 = vpop.permute.xlu0 %813
      %831 = vrot.lane.b32.xlu0 %v379, 15
      %v832 = vpop.permute.xlu0 %831
      %833 = vrot.lane.b32.xlu0 %v380, 15
      %v834 = vpop.permute.xlu0 %833
      %835 = vrot.lane.b32.xlu0 %v381, 15
      %v836 = vpop.permute.xlu0 %835
      %837 = vrot.lane.b32.xlu0 %v382, 15
      %v838 = vpop.permute.xlu0 %837
      %839 = vrot.lane.b32.xlu0 %v383, 15
      %v840 = vpop.permute.xlu0 %839
      %841 = vrot.lane.b32.xlu0 %v384, 15
      %v842 = vpop.permute.xlu0 %841
      %843 = vrot.lane.b32.xlu0 %v385, 15
      %v844 = vpop.permute.xlu0 %843
      %845 = vrot.lane.b32.xlu0 %v386, 15
      %v846 = vpop.permute.xlu0 %845
      %863 = vrot.lane.b32.xlu0 %v495, 20
      %v864 = vpop.permute.xlu0 %863
      %865 = vrot.lane.b32.xlu0 %v496, 20
      %v866 = vpop.permute.xlu0 %865
      %867 = vrot.lane.b32.xlu0 %v497, 20
      %v868 = vpop.permute.xlu0 %867
      %869 = vrot.lane.b32.xlu0 %v498, 20
      %v870 = vpop.permute.xlu0 %869
      %871 = vrot.lane.b32.xlu0 %v499, 20
      %v872 = vpop.permute.xlu0 %871
      %873 = vrot.lane.b32.xlu0 %v500, 20
      %v874 = vpop.permute.xlu0 %873
      %875 = vrot.lane.b32.xlu0 %v501, 20
      %v876 = vpop.permute.xlu0 %875
      %877 = vrot.lane.b32.xlu0 %v502, 20
      %v878 = vpop.permute.xlu0 %877
      %895 = vrot.lane.b32.xlu0 %v555, 25
      %v896 = vpop.permute.xlu0 %895
      %897 = vrot.lane.b32.xlu0 %v556, 25
      %v898 = vpop.permute.xlu0 %897
      %899 = vrot.lane.b32.xlu0 %v557, 25
      %v900 = vpop.permute.xlu0 %899
      %901 = vrot.lane.b32.xlu0 %v558, 25
      %v902 = vpop.permute.xlu0 %901
      %903 = vrot.lane.b32.xlu0 %v559, 25
      %v904 = vpop.permute.xlu0 %903
      %905 = vrot.lane.b32.xlu0 %v560, 25
      %v906 = vpop.permute.xlu0 %905
      %907 = vrot.lane.b32.xlu0 %v561, 25
      %v908 = vpop.permute.xlu0 %907
      %909 = vrot.lane.b32.xlu0 %v562, 25
      %v910 = vpop.permute.xlu0 %909
      %927 = vrot.lane.b32.xlu0 %v575, 30
      %v928 = vpop.permute.xlu0 %927
      %929 = vrot.lane.b32.xlu0 %v576, 30
      %v930 = vpop.permute.xlu0 %929
      %931 = vrot.lane.b32.xlu0 %v577, 30
      %v932 = vpop.permute.xlu0 %931
      %933 = vrot.lane.b32.xlu0 %v578, 30
      %v934 = vpop.permute.xlu0 %933
      %935 = vrot.lane.b32.xlu0 %v579, 30
      %v936 = vpop.permute.xlu0 %935
      %937 = vrot.lane.b32.xlu0 %v580, 30
      %v938 = vpop.permute.xlu0 %937
      %939 = vrot.lane.b32.xlu0 %v581, 30
      %v940 = vpop.permute.xlu0 %939
      %941 = vrot.lane.b32.xlu0 %v582, 30
      %v942 = vpop.permute.xlu0 %941
      %959 = vrot.lane.b32.xlu0 %v691, 35
      %v960 = vpop.permute.xlu0 %959
      %961 = vrot.lane.b32.xlu0 %v692, 35
      %v962 = vpop.permute.xlu0 %961
      %963 = vrot.lane.b32.xlu0 %v693, 35
      %v964 = vpop.permute.xlu0 %963
      %965 = vrot.lane.b32.xlu0 %v694, 35
      %v966 = vpop.permute.xlu0 %965
      %967 = vrot.lane.b32.xlu0 %v695, 35
      %v968 = vpop.permute.xlu0 %967
      %969 = vrot.lane.b32.xlu0 %v696, 35
      %v970 = vpop.permute.xlu0 %969
      %971 = vrot.lane.b32.xlu0 %v697, 35
      %v972 = vpop.permute.xlu0 %971
      %973 = vrot.lane.b32.xlu0 %v698, 35
      %v974 = vpop.permute.xlu0 %973
      %991 = vrot.lane.b32.xlu0 %v751, 40
      %v992 = vpop.permute.xlu0 %991
      %993 = vrot.lane.b32.xlu0 %v752, 40
      %v994 = vpop.permute.xlu0 %993
      %995 = vrot.lane.b32.xlu0 %v753, 40
      %v996 = vpop.permute.xlu0 %995
      %997 = vrot.lane.b32.xlu0 %v754, 40
      %v998 = vpop.permute.xlu0 %997
      %999 = vrot.lane.b32.xlu0 %v755, 40
      %v1000 = vpop.permute.xlu0 %999
      %1001 = vrot.lane.b32.xlu0 %v756, 40
      %v1002 = vpop.permute.xlu0 %1001
      %1003 = vrot.lane.b32.xlu0 %v757, 40
      %v1004 = vpop.permute.xlu0 %1003
      %1005 = vrot.lane.b32.xlu0 %v758, 40
      %v1006 = vpop.permute.xlu0 %1005
      %vm1015 = vcmask 39936
      %v1016 = vsel %vm1015, %v177, %v768
      %v1017 = vsel %vm1015, %v178, %v770
      %v1018 = vsel %vm1015, %v179, %v772
      %v1019 = vsel %vm1015, %v180, %v774
      %v1020 = vsel %vm1015, %v181, %v776
      %v1021 = vsel %vm1015, %v182, %v778
      %v1022 = vsel %vm1015, %v183, %v780
      %v1023 = vsel %vm1015, %v184, %v782
      %vm1024 = vcmask 80896
      %v1025 = vsel %vm1024, %v1016, %v800
      %v1026 = vsel %vm1024, %v1017, %v802
      %v1027 = vsel %vm1024, %v1018, %v804
      %v1028 = vsel %vm1024, %v1019, %v806
      %v1029 = vsel %vm1024, %v1020, %v808
      %v1030 = vsel %vm1024, %v1021, %v810
      %v1031 = vsel %vm1024, %v1022, %v812
      %v1032 = vsel %vm1024, %v1023, %v814
      %vm1033 = vcmask 121856
      %v1034 = vsel %vm1033, %v1025, %v832
      %v1035 = vsel %vm1033, %v1026, %v834
      %v1036 = vsel %vm1033, %v1027, %v836
      %v1037 = vsel %vm1033, %v1028, %v838
      %v1038 = vsel %vm1033, %v1029, %v840
      %v1039 = vsel %vm1033, %v1030, %v842
      %v1040 = vsel %vm1033, %v1031, %v844
      %v1041 = vsel %vm1033, %v1032, %v846
      %vm1042 = vcmask 162816
      %v1043 = vsel %vm1042, %v1034, %v864
      %v1044 = vsel %vm1042, %v1035, %v866
      %v1045 = vsel %vm1042, %v1036, %v868
      %v1046 = vsel %vm1042, %v1037, %v870
      %v1047 = vsel %vm1042, %v1038, %v872
      %v1048 = vsel %vm1042, %v1039, %v874
      %v1049 = vsel %vm1042, %v1040, %v876
      %v1050 = vsel %vm1042, %v1041, %v878
      %vm1051 = vcmask 203776
      %v1052 = vsel %vm1051, %v1043, %v896
      %v1053 = vsel %vm1051, %v1044, %v898
      %v1054 = vsel %vm1051, %v1045, %v900
      %v1055 = vsel %vm1051, %v1046, %v902
      %v1056 = vsel %vm1051, %v1047, %v904
      %v1057 = vsel %vm1051, %v1048, %v906
      %v1058 = vsel %vm1051, %v1049, %v908
      %v1059 = vsel %vm1051, %v1050, %v910
      %vm1060 = vcmask 244736
      %v1061 = vsel %vm1060, %v1052, %v928
      %v1062 = vsel %vm1060, %v1053, %v930
      %v1063 = vsel %vm1060, %v1054, %v932
      %v1064 = vsel %vm1060, %v1055, %v934
      %v1065 = vsel %vm1060, %v1056, %v936
      %v1066 = vsel %vm1060, %v1057, %v938
      %v1067 = vsel %vm1060, %v1058, %v940
      %v1068 = vsel %vm1060, %v1059, %v942
      %vm1069 = vcmask 285696
      %v1070 = vsel %vm1069, %v1061, %v960
      %v1071 = vsel %vm1069, %v1062, %v962
      %v1072 = vsel %vm1069, %v1063, %v964
      %v1073 = vsel %vm1069, %v1064, %v966
      %v1074 = vsel %vm1069, %v1065, %v968
      %v1075 = vsel %vm1069, %v1066, %v970
      %v1076 = vsel %vm1069, %v1067, %v972
      %v1077 = vsel %vm1069, %v1068, %v974
      %vm1078 = vcmask 326656
      %v1079 = vsel %vm1078, %v1070, %v992
      %v1080 = vsel %vm1078, %v1071, %v994
      %v1081 = vsel %vm1078, %v1072, %v996
      %v1082 = vsel %vm1078, %v1073, %v998
      %v1083 = vsel %vm1078, %v1074, %v1000
      %v1084 = vsel %vm1078, %v1075, %v1002
      %v1085 = vsel %vm1078, %v1076, %v1004
      %v1086 = vsel %vm1078, %v1077, %v1006
      %v1087 = vpack.c.bf16 %v1080, %v1079
      %v1088 = vpack.c.bf16 %v1082, %v1081
      %v1089 = vpack.c.bf16 %v1084, %v1083
      %v1090 = vpack.c.bf16 %v1086, %v1085
      %v1091 = vld [vmem:[%s1] sm:$0xf]
      %v1092 = vld [vmem:[%s1 + $0x4] sm:$0xf]
      %v1093 = vld [vmem:[%s1 + $0x8] sm:$0xf]
      %v1094 = vld [vmem:[%s1 + $0xc] sm:$0xf]
      %v1095 = vld [vmem:[%s1 + $0x10] sm:$0xf]
      %v1096 = vld [vmem:[%s1 + $0x14] sm:$0x7]
      %v1103 = vunpack.c.l.b16 %v1091
      %v1104 = vunpack.c.l.b16 %v1092
      %v1105 = vunpack.c.l.b16 %v1093
      %v1106 = vunpack.c.l.b16 %v1094
      %v1107 = vunpack.c.l.b16 %v1095
      %v1108 = vunpack.c.l.b16 %v1096
      %v1109 = vpack.c.b16 %v1104, %v1103
      %v1110 = vpack.c.b16 %v1106, %v1105
      %v1111 = vpack.c.b16 %v1108, %v1107
      %vm1114 = vcmask 367616
      %v1116 = vsel %vm1114, %v1087, 0
      %v1119 = vsel %vm1114, %v1088, 0
      %v1122 = vsel %vm1114, %v1089, 0
      %v1125 = vsel %vm1114, %v1090, 0
      %vm1127 = vcmask 1045504
      %vm1128 = vcmask 1046528
      %v1129 = vsel %vm1127, 4294967295, 65535
      %v1130 = vsel %vm1128, %v1129, 0
      %v1132 = vand.u32 %v1111, %v1130
      %1134 = vmatprep.subr.bf16.mxu0 0
      %1135 = vmatpush1.bf16.msra.mxu0 %v1109
      %1136 = vmatprep.subr.bf16.mxu0 0
      %1137 = vmatpush1.bf16.msra.mxu0 %v1110
      %1138 = vmatprep.subr.bf16.mxu0 0
      %1139 = vmatpush1.bf16.msra.mxu0 %v1132
      %1140 = vmatprep.subr.bf16.mxu0 0
      %1141 = vmatpush1.bf16.msra.mxu0 0
      %1142 = vmatprep.subr.bf16.mxu0 0
      %1143 = vmatpush1.bf16.msra.mxu0 0
      %1144 = vmatprep.subr.bf16.mxu0 0
      %1145 = vmatpush1.bf16.msra.mxu0 0
      %1146 = vmatprep.subr.bf16.mxu0 0
      %1147 = vmatpush1.bf16.msra.mxu0 0
      %1148 = vmatprep.subr.bf16.mxu0 0
      %1149 = vmatpush1.bf16.msra.mxu0 0
      %1150 = vmatprep.subr.bf16.mxu0 0
      %1151 = vmatpush1.bf16.msra.mxu0 0
      %1152 = vmatprep.subr.bf16.mxu0 0
      %1153 = vmatpush1.bf16.msra.mxu0 0
      %1154 = vmatprep.subr.bf16.mxu0 0
      %1155 = vmatpush1.bf16.msra.mxu0 0
      %1156 = vmatprep.subr.bf16.mxu0 0
      %1157 = vmatpush1.bf16.msra.mxu0 0
      %1158 = vmatprep.subr.bf16.mxu0 0
      %1159 = vmatpush1.bf16.msra.mxu0 0
      %1160 = vmatprep.subr.bf16.mxu0 0
      %1161 = vmatpush1.bf16.msra.mxu0 0
      %1162 = vmatprep.subr.bf16.mxu0 0
      %1163 = vmatpush1.bf16.msra.mxu0 0
      %1164 = vmatprep.subr.bf16.mxu0 0
      %1165 = vmatpush1.bf16.msra.mxu0 0
      %1166 = vmatprep.mubr.bf16.mxu0 0
      %1167 = vmatmul.mubr.bf16.gmra.mrb[0].mxu0 %v1116
      %v1168 = vpop.f32.mrb[0].mxu0
      %v1169 = vadd.f32 0.0, %v1168
      %v1170 = vpop.f32.mrb[0].mxu0
      %v1171 = vpop.f32.mrb[0].mxu0
      %v1172 = vadd.f32 0.0, %v1171
      %v1173 = vpop.f32.mrb[0].mxu0
      %1174 = vmatprep.mubr.bf16.mxu0 0
      %1175 = vmatmul.mubr.bf16.gmra.mrb[0].mxu0 %v1119
      %v1176 = vpop.f32.mrb[0].mxu0
      %v1177 = vadd.f32 0.0, %v1176
      %v1178 = vpop.f32.mrb[0].mxu0
      %v1179 = vpop.f32.mrb[0].mxu0
      %v1180 = vadd.f32 0.0, %v1179
      %v1181 = vpop.f32.mrb[0].mxu0
      %1182 = vmatprep.mubr.bf16.mxu0 0
      %1183 = vmatmul.mubr.bf16.gmra.mrb[0].mxu0 %v1122
      %v1184 = vpop.f32.mrb[0].mxu0
      %v1185 = vadd.f32 0.0, %v1184
      %v1186 = vpop.f32.mrb[0].mxu0
      %v1187 = vpop.f32.mrb[0].mxu0
      %v1188 = vadd.f32 0.0, %v1187
      %v1189 = vpop.f32.mrb[0].mxu0
      %1190 = vmatprep.mubr.bf16.mxu0 0
      %1191 = vmatmul.mubr.bf16.gmra.mrb[0].mxu0 %v1125
      %v1192 = vpop.f32.mrb[0].mxu0
      %v1193 = vadd.f32 0.0, %v1192
      %v1194 = vpop.f32.mrb[0].mxu0
      %v1195 = vpop.f32.mrb[0].mxu0
      %v1196 = vadd.f32 0.0, %v1195
      %v1197 = vpop.f32.mrb[0].mxu0
      %1198 = vdwg.mxu0
      %v1199 = vmax.f32 %v1169, 0.0
      %v1200 = vmax.f32 %v1172, 0.0
      %v1201 = vmax.f32 %v1177, 0.0
      %v1202 = vmax.f32 %v1180, 0.0
      %v1203 = vmax.f32 %v1185, 0.0
      %v1204 = vmax.f32 %v1188, 0.0
      %v1205 = vmax.f32 %v1193, 0.0
      %v1206 = vmax.f32 %v1196, 0.0
      %v1211 = vrot.slane %v1201, 7
      %vm1212 = vcmask 1041409
      %v1213 = vsel %vm1212, %v1211, %v1199
      %v1214 = vrot.slane %v1203, 6
      %vm1215 = vcmask 1042434
      %v1216 = vsel %vm1215, %v1214, %v1213
      %v1217 = vrot.slane %v1205, 5
      %vm1218 = vcmask 1043459
      %v1219 = vsel %vm1218, %v1217, %v1216
      %v1221 = vrot.slane %v1199, 1
      %v1222 = vsel %vm1212, %v1201, %v1221
      %v1223 = vrot.slane %v1203, 7
      %v1224 = vsel %vm1215, %v1223, %v1222
      %v1225 = vrot.slane %v1205, 6
      %v1226 = vsel %vm1218, %v1225, %v1224
      %1227 = vrot.lane.b32.xlu0 %v1226, 8
      %v1228 = vpop.permute.xlu0 %1227
      %v1230 = vrot.slane %v1199, 2
      %v1231 = vrot.slane %v1201, 1
      %v1232 = vsel %vm1212, %v1231, %v1230
      %v1233 = vsel %vm1215, %v1203, %v1232
      %v1234 = vrot.slane %v1205, 7
      %v1235 = vsel %vm1218, %v1234, %v1233
      %1236 = vrot.lane.b32.xlu0 %v1235, 16
      %v1237 = vpop.permute.xlu0 %1236
      %v1239 = vrot.slane %v1199, 3
      %v1240 = vrot.slane %v1201, 2
      %v1241 = vsel %vm1212, %v1240, %v1239
      %v1242 = vrot.slane %v1203, 1
      %v1243 = vsel %vm1215, %v1242, %v1241
      %v1244 = vsel %vm1218, %v1205, %v1243
      %1245 = vrot.lane.b32.xlu0 %v1244, 24
      %v1246 = vpop.permute.xlu0 %1245
      %v1248 = vrot.slane %v1199, 4
      %v1249 = vrot.slane %v1201, 3
      %v1250 = vsel %vm1212, %v1249, %v1248
      %v1251 = vrot.slane %v1203, 2
      %v1252 = vsel %vm1215, %v1251, %v1250
      %v1253 = vrot.slane %v1205, 1
      %v1254 = vsel %vm1218, %v1253, %v1252
      %1255 = vrot.lane.b32.xlu0 %v1254, 32
      %v1256 = vpop.permute.xlu0 %1255
      %v1258 = vrot.slane %v1199, 5
      %v1259 = vrot.slane %v1201, 4
      %v1260 = vsel %vm1212, %v1259, %v1258
      %v1261 = vrot.slane %v1203, 3
      %v1262 = vsel %vm1215, %v1261, %v1260
      %v1263 = vrot.slane %v1205, 2
      %v1264 = vsel %vm1218, %v1263, %v1262
      %1265 = vrot.lane.b32.xlu0 %v1264, 40
      %v1266 = vpop.permute.xlu0 %1265
      %v1268 = vrot.slane %v1199, 6
      %v1269 = vrot.slane %v1201, 5
      %v1270 = vsel %vm1212, %v1269, %v1268
      %v1271 = vrot.slane %v1203, 4
      %v1272 = vsel %vm1215, %v1271, %v1270
      %v1273 = vrot.slane %v1205, 3
      %v1274 = vsel %vm1218, %v1273, %v1272
      %1275 = vrot.lane.b32.xlu0 %v1274, 48
      %v1276 = vpop.permute.xlu0 %1275
      %v1278 = vrot.slane %v1199, 7
      %v1279 = vrot.slane %v1201, 6
      %v1280 = vsel %vm1212, %v1279, %v1278
      %v1281 = vrot.slane %v1203, 5
      %v1282 = vsel %vm1215, %v1281, %v1280
      %v1283 = vrot.slane %v1205, 4
      %v1284 = vsel %vm1218, %v1283, %v1282
      %1285 = vrot.lane.b32.xlu0 %v1284, 56
      %v1286 = vpop.permute.xlu0 %1285
      %v1292 = vrot.slane %v1202, 7
      %v1293 = vsel %vm1212, %v1292, %v1200
      %v1294 = vrot.slane %v1204, 6
      %v1295 = vsel %vm1215, %v1294, %v1293
      %v1296 = vrot.slane %v1206, 5
      %v1297 = vsel %vm1218, %v1296, %v1295
      %1298 = vrot.lane.b32.xlu0 %v1297, 64
      %v1299 = vpop.permute.xlu0 %1298
      %v1301 = vrot.slane %v1200, 1
      %v1302 = vsel %vm1212, %v1202, %v1301
      %v1303 = vrot.slane %v1204, 7
      %v1304 = vsel %vm1215, %v1303, %v1302
      %v1305 = vrot.slane %v1206, 6
      %v1306 = vsel %vm1218, %v1305, %v1304
      %1307 = vrot.lane.b32.xlu0 %v1306, 72
      %v1308 = vpop.permute.xlu0 %1307
      %v1310 = vrot.slane %v1200, 2
      %v1311 = vrot.slane %v1202, 1
      %v1312 = vsel %vm1212, %v1311, %v1310
      %v1313 = vsel %vm1215, %v1204, %v1312
      %v1314 = vrot.slane %v1206, 7
      %v1315 = vsel %vm1218, %v1314, %v1313
      %1316 = vrot.lane.b32.xlu0 %v1315, 80
      %v1317 = vpop.permute.xlu0 %1316
      %v1319 = vrot.slane %v1200, 3
      %v1320 = vrot.slane %v1202, 2
      %v1321 = vsel %vm1212, %v1320, %v1319
      %v1322 = vrot.slane %v1204, 1
      %v1323 = vsel %vm1215, %v1322, %v1321
      %v1324 = vsel %vm1218, %v1206, %v1323
      %1325 = vrot.lane.b32.xlu0 %v1324, 88
      %v1326 = vpop.permute.xlu0 %1325
      %v1328 = vrot.slane %v1200, 4
      %v1329 = vrot.slane %v1202, 3
      %v1330 = vsel %vm1212, %v1329, %v1328
      %v1331 = vrot.slane %v1204, 2
      %v1332 = vsel %vm1215, %v1331, %v1330
      %v1333 = vrot.slane %v1206, 1
      %v1334 = vsel %vm1218, %v1333, %v1332
      %1335 = vrot.lane.b32.xlu0 %v1334, 96
      %v1336 = vpop.permute.xlu0 %1335
      %v1338 = vrot.slane %v1200, 5
      %v1339 = vrot.slane %v1202, 4
      %v1340 = vsel %vm1212, %v1339, %v1338
      %v1341 = vrot.slane %v1204, 3
      %v1342 = vsel %vm1215, %v1341, %v1340
      %v1343 = vrot.slane %v1206, 2
      %v1344 = vsel %vm1218, %v1343, %v1342
      %1345 = vrot.lane.b32.xlu0 %v1344, 104
      %v1346 = vpop.permute.xlu0 %1345
      %v1348 = vrot.slane %v1200, 6
      %v1349 = vrot.slane %v1202, 5
      %v1350 = vsel %vm1212, %v1349, %v1348
      %v1351 = vrot.slane %v1204, 4
      %v1352 = vsel %vm1215, %v1351, %v1350
      %v1353 = vrot.slane %v1206, 3
      %v1354 = vsel %vm1218, %v1353, %v1352
      %1355 = vrot.lane.b32.xlu0 %v1354, 112
      %v1356 = vpop.permute.xlu0 %1355
      %v1358 = vrot.slane %v1200, 7
      %v1359 = vrot.slane %v1202, 6
      %v1360 = vsel %vm1212, %v1359, %v1358
      %v1361 = vrot.slane %v1204, 5
      %v1362 = vsel %vm1215, %v1361, %v1360
      %v1363 = vrot.slane %v1206, 4
      %v1364 = vsel %vm1218, %v1363, %v1362
      %1365 = vrot.lane.b32.xlu0 %v1364, 120
      %v1366 = vpop.permute.xlu0 %1365
      %vm1368 = vcmask 64512
      %v1369 = vsel %vm1368, %v1219, %v1228
      %vm1370 = vcmask 130048
      %v1371 = vsel %vm1370, %v1369, %v1237
      %vm1372 = vcmask 195584
      %v1373 = vsel %vm1372, %v1371, %v1246
      %vm1374 = vcmask 261120
      %v1375 = vsel %vm1374, %v1373, %v1256
      %v1376 = vsel %vm1078, %v1375, %v1266
      %vm1377 = vcmask 392192
      %v1378 = vsel %vm1377, %v1376, %v1276
      %vm1379 = vcmask 457728
      %v1380 = vsel %vm1379, %v1378, %v1286
      %vm1381 = vcmask 523264
      %v1382 = vsel %vm1381, %v1380, %v1299
      %vm1383 = vcmask 588800
      %v1384 = vsel %vm1383, %v1382, %v1308
      %vm1385 = vcmask 654336
      %v1386 = vsel %vm1385, %v1384, %v1317
      %vm1387 = vcmask 719872
      %v1388 = vsel %vm1387, %v1386, %v1326
      %vm1389 = vcmask 785408
      %v1390 = vsel %vm1389, %v1388, %v1336
      %vm1391 = vcmask 850944
      %v1392 = vsel %vm1391, %v1390, %v1346
      %vm1393 = vcmask 916480
      %v1394 = vsel %vm1393, %v1392, %v1356
      %vm1395 = vcmask 982016
      %v1396 = vsel %vm1395, %v1394, %v1366
      %1397 = vst [vmem:[%s163] sm:$0xf] %v1396
      %p1398 = scmp.lt.s32.totalorder %s17, 1
      %s1399 = scalar_select %p1398, %s17, 1
      %p1400 = scmp.lt.s32.totalorder %s18, 3
      %s1401 = scalar_select %p1400, %s18, 3
      %s1402 = smul.addr %s1399, 4
      %s1403 = sadd.s32 %s1401, %s1402
      %s1404 = smul.addr %s1403, 4
      %s1405 = scalar_lea.vmem %s2, %s1404
      // Predicated region
      $region29: #{relu_conv_bn.3} parent=27 // pred_check
        %p1406 = pneg %p92
      $region30: #{relu_conv_bn.3} parent=27 // pred_check_branch
        %1408 = sbr.rel (%p1406) target = $region32
      $region31: #{relu_conv_bn.3} parent=27 // pred_region
        _
      $region32: #{relu_conv_bn.3} parent=27 // pred_fallthru
        _
    $region28: #{relu_conv_bn.3} parent=5 // pred_fallthru
      _
    %p1409 = scmp.le.s32.totalorder 2, %s8
    // Predicated region
    $region33: #{relu_conv_bn.3} parent=5 // pred_check
      %p1410 = pneg %p1409
    $region34: #{relu_conv_bn.3} parent=5 // pred_check_branch
      %1412 = sbr.rel (%p1410) target = $region36
    $region35: #{relu_conv_bn.3} parent=5 // pred_region
      %s1413 = ssub.s32 %s8, 2
      // Predicated region
      $region37: #{relu_conv_bn.3} parent=35 // pred_check
        %p1414 = pneg %p98
      $region38: #{relu_conv_bn.3} parent=35 // pred_check_branch
        %1416 = sbr.rel (%p1414) target = $region40
      $region39: #{relu_conv_bn.3} parent=35 // pred_region
        %p1417 = scmp.lt.s32.totalorder %s19, 1
        %s1418 = scalar_select %p1417, %s19, 1
        %p1419 = scmp.lt.s32.totalorder %s20, 3
        %s1420 = scalar_select %p1419, %s20, 3
        %s1421 = smul.addr %s1418, 4
        %s1422 = sadd.s32 %s1420, %s1421
        %s1423 = smul.addr %s1422, 4
        %s1424 = scalar_lea.vmem %s2, %s1423
      $region40: #{relu_conv_bn.3} parent=35 // pred_fallthru
        _
    $region36: #{relu_conv_bn.3} parent=5 // pred_fallthru
      _
  $region6: #{relu_conv_bn.3} parent=0 // loop_footer
    %s12 = sadd.s32 1, %s8
  $region7: #{relu_conv_bn.3} parent=0 // loop_footer_branch
    %7 = sbr.rel target = $region3
  $region8: #{relu_conv_bn.3} parent=0 // loop_exit
    _

</llo_original>
